<compile_context>
chip_gen: v7x
topology: tpu7x:2x2x1
jax: 0.10.0
libtpu: 0.0.40
codegen_flags: <defaults>
</compile_context>

<pallas_src>
import math

import jax
import jax.numpy as jnp
from jax.experimental import pallas as pl
from jax.experimental.pallas import tpu as pltpu

# ----------------------------- module config --------------------------------
C_S = 64                  # cfg.c_s
C_POS_EMB = 32            # cfg.c_pos_emb (== aatype_emb_dim)
C_TIMESTEP_EMB = 32       # cfg.c_timestep_emb
C_NODE_PRE = 1280         # fixed in module
C_EXTRA = C_POS_EMB + C_TIMESTEP_EMB           # 64
TOTAL_FEATS = C_EXTRA + C_NODE_PRE             # 1344
NUM_AATYPES = 21
NUM_AATYPES_PAD = 32      # padded one-hot width (extra table rows are zero)
ROPE_BASE = 10000.0
TIME_MAX_POSITIONS = 2056.0
MAX_TILE_L = 2048         # double-buffered f32 xn at 2048 ~ 26-28 MiB VMEM
VMEM_LIMIT_BYTES = 40 << 20   # > v5e 16 MiB default, < v7x 64 MiB physical


# ------------------------------ Pallas kernel --------------------------------
def node_mlp_rope_kernel(am_ref, xn_ref, aw1_ref, tc_ref, b1_ref,
                         w1n_ref, w2f_ref, b2f_ref, cs_ref, o_ref):
    """One (L-tile, batch) block per grid step.

    am_ref : (tile_l, 2) f32    [aatype id as float | mask]
    xn_ref : (tile_l, 1280) f32 node_repr_pre (cast to bf16 in-kernel)
    aw1_ref: (32, 64) f32       aatype_emb_table @ W1_aatype_rows (zero-padded)
    tc_ref : (1, 64) f32        time_emb(batch) @ W1_time_rows
    b1_ref : (1, 64) f32
    w1n_ref: (1280, 64) bf16    W1 rows for node_repr_pre
    w2f_ref: (64, 128) f32      [w2 | w2 @ swap]
    b2f_ref: (1, 128) f32       [b2 | b2 @ swap]
    cs_ref : (tile_l, 128) bf16 [cos | sin] RoPE tables
    o_ref  : (tile_l, 64) f32
    """
    tile_l = am_ref.shape[0]

    # Linear1, dominant K=1280 half: cast f32 -> bf16 in-kernel (no wrapper
    # materialization / extra HBM pass), single-pass bf16 MXU matmul.
    xn = xn_ref[...].astype(jnp.bfloat16)
    h = jnp.dot(xn, w1n_ref[...], preferred_element_type=jnp.float32)

    # aatype + time contributions folded through W1:
    #   mask * ( onehot(aatype) @ (E @ W1_aa)  +  t_emb @ W1_time )
    am = am_ref[...]
    aat = am[:, 0:1]                       # aatype id (exact in f32 for 0..20)
    msk = am[:, 1:2]
    classes = jax.lax.broadcasted_iota(
        jnp.int32, (tile_l, NUM_AATYPES_PAD), 1).astype(jnp.float32)
    onehot = (classes == aat).astype(jnp.float32)          # (tile_l, 32)
    aa_contrib = jnp.dot(onehot, aw1_ref[...], preferred_element_type=jnp.float32)

    h = h + (aa_contrib + tc_ref[...]) * msk + b1_ref[...]
    h = jnp.maximum(h, 0.0)
    # TODO(synk): nn.Dropout is identity at inference; no dropout mask applied.

    # Linear2 fused with the RoPE partner permutation: one 128-lane-wide MXU
    # pass produces [y | y@swap] with the bias folded through the swap.
    yb = jnp.dot(h, w2f_ref[...], preferred_element_type=jnp.float32) + b2f_ref[...]

    prod = yb * cs_ref[...].astype(jnp.float32)             # [y*cos | partner*sin]
    # TODO(synk): output stays (.., 64) f32 (64-lane masked stores); lane-dense
    # repacking to 128 would need an in-kernel relayout for ~8% of the bytes.
    o_ref[...] = (prod[:, :C_S] + prod[:, C_S:]).astype(o_ref.dtype)


# ------------------------------ host-side tables ------------------------------
def _rope_swap_matrix(d):
    # partner[j] = -y[j+1] for even j, +y[j-1] for odd j  (interleaved RoPE)
    row = jnp.arange(d)[:, None]
    col = jnp.arange(d)[None, :]
    col_even = (col % 2) == 0
    return jnp.where((row == col + 1) & col_even, -1.0,
                     jnp.where((row == col - 1) & (~col_even), 1.0, 0.0)
                     ).astype(jnp.float32)


def _rope_cos_sin(L, d):
    # angle[l, j] = l * base^{-2*(j//2)/d}; returns (L, 2d) = [cos | sin]
    pos = jnp.arange(L, dtype=jnp.float32)[:, None]
    pair = (jnp.arange(d, dtype=jnp.int32) // 2).astype(jnp.float32)[None, :]
    inv_freq = jnp.exp(-(2.0 * pair / float(d)) * math.log(ROPE_BASE))
    ang = pos * inv_freq
    return jnp.concatenate([jnp.cos(ang), jnp.sin(ang)], axis=-1)


# --------------------------- one-time setup (hoisted) -------------------------
def prepare_node_embedder(params, max_len):
    """Precompute all kernel-ready constants once (out of the per-call hot path)."""
    w1 = params["w1"]                                             # (1344, 64)
    aat_w1 = params["aatype_emb"] @ w1[:C_POS_EMB]                # (21, 64)
    aat_w1 = jnp.pad(aat_w1, ((0, NUM_AATYPES_PAD - NUM_AATYPES), (0, 0)))
    w1_time = w1[C_POS_EMB:C_EXTRA]                               # (32, 64)
    w1_node = w1[C_EXTRA:].astype(jnp.bfloat16)                   # (1280, 64) bf16

    swap = _rope_swap_matrix(C_S)
    w2f = jnp.concatenate([params["w2"], params["w2"] @ swap], axis=-1)   # (64, 128)
    b2f = jnp.concatenate([params["b2"], params["b2"] @ swap], axis=-1)   # (1, 128)
    cs = _rope_cos_sin(max_len, C_S).astype(jnp.bfloat16)                 # (max_len, 128)

    return {"aat_w1": aat_w1, "w1_time": w1_time, "w1_node": w1_node,
            "b1": params["b1"], "w2f": w2f, "b2f": b2f, "cs": cs}


# ------------------------------ wrapper ---------------------------------------
def node_embedder_forward(prepped, timesteps, aatype, node_repr_pre, mask):
    """timesteps: [B,1] f32, aatype: [B,L] i32, node_repr_pre: [B,L,1280] f32,
    mask: [B,L] f32. Returns [B, L, C_S] f32."""
    B, L = mask.shape
    assert prepped["cs"].shape[0] >= L, "prepare_node_embedder max_len < L"

    # Sinusoidal time embedding (per batch, tiny) folded through its W1 rows.
    t = timesteps[:, 0].astype(jnp.float32) * TIME_MAX_POSITIONS
    half = C_TIMESTEP_EMB // 2
    freqs = jnp.exp(jnp.arange(half, dtype=jnp.float32)
                    * -(math.log(TIME_MAX_POSITIONS) / (half - 1)))
    ang = t[:, None] * freqs[None, :]                                  # [B, half]
    t_emb = jnp.concatenate([jnp.sin(ang), jnp.cos(ang)], axis=-1)     # [B, 32]
    t_contrib = (t_emb @ prepped["w1_time"])[:, None, :]               # [B, 1, 64]

    # Narrow side input: aatype id + mask packed together (16 B/row of HBM).
    am = jnp.stack([aatype.astype(jnp.float32), mask.astype(jnp.float32)],
                   axis=-1)                                            # [B, L, 2]

    cs = prepped["cs"][:L]                                             # (L, 128) bf16

    # L-tile: biggest tile that fits VMEM comfortably; force >=2 L-tiles when
    # B == 1 so both v7x TensorCores get work.
    tile_l = L if L <= MAX_TILE_L else MAX_TILE_L
    if B == 1 and L > 16:
        half_l = -(-L // 2)
        tile_l = min(tile_l, -(-half_l // 16) * 16)
    grid = (pl.cdiv(L, tile_l), B)     # B innermost -> cs / weights not re-DMA'd

    out = pl.pallas_call(
        node_mlp_rope_kernel,
        out_shape=jax.ShapeDtypeStruct((B, L, C_S), jnp.float32),
        grid_spec=pltpu.PrefetchScalarGridSpec(
            num_scalar_prefetch=0,
            grid=grid,
            in_specs=[
                pl.BlockSpec((None, tile_l, 2), lambda l, b: (b, l, 0)),            # am
                pl.BlockSpec((None, tile_l, C_NODE_PRE), lambda l, b: (b, l, 0)),   # xn f32
                pl.BlockSpec((NUM_AATYPES_PAD, C_S), lambda l, b: (0, 0)),          # aat_w1
                pl.BlockSpec((None, 1, C_S), lambda l, b: (b, 0, 0)),               # t_contrib
                pl.BlockSpec((1, C_S), lambda l, b: (0, 0)),                        # b1
                pl.BlockSpec((C_NODE_PRE, C_S), lambda l, b: (0, 0)),               # w1n bf16
                pl.BlockSpec((C_S, 2 * C_S), lambda l, b: (0, 0)),                  # w2f
                pl.BlockSpec((1, 2 * C_S), lambda l, b: (0, 0)),                    # b2f
                pl.BlockSpec((tile_l, 2 * C_S), lambda l, b: (l, 0)),               # cs bf16
            ],
            out_specs=pl.BlockSpec((None, tile_l, C_S), lambda l, b: (b, l, 0)),
        ),
        compiler_params=pltpu.CompilerParams(
            dimension_semantics=("parallel", "parallel"),
            vmem_limit_bytes=VMEM_LIMIT_BYTES,
        ),
    )(am, node_repr_pre, prepped["aat_w1"], t_contrib, prepped["b1"],
      prepped["w1_node"], prepped["w2f"], prepped["b2f"], cs)
    return out


# ------------------------------ parameter init --------------------------------
def init_params(key):
    k0, k1, k2, k3, k4 = jax.random.split(key, 5)
    # nn.Embedding default: N(0, 1)
    aatype_emb = jax.random.normal(k0, (NUM_AATYPES, C_POS_EMB), jnp.float32)
    # nn.Linear default: U(-1/sqrt(fan_in), 1/sqrt(fan_in))
    lim1 = 1.0 / math.sqrt(TOTAL_FEATS)
    w1 = jax.random.uniform(k1, (TOTAL_FEATS, C_S), jnp.float32, -lim1, lim1)
    b1 = jax.random.uniform(k2, (1, C_S), jnp.float32, -lim1, lim1)
    lim2 = 1.0 / math.sqrt(C_S)
    w2 = jax.random.uniform(k3, (C_S, C_S), jnp.float32, -lim2, lim2)
    b2 = jax.random.uniform(k4, (1, C_S), jnp.float32, -lim2, lim2)
    return {"aatype_emb": aatype_emb, "w1": w1, "b1": b1, "w2": w2, "b2": b2}


# ------------------------------ main -------------------------------------------
if __name__ == "__main__":
    key = jax.random.PRNGKey(0)
    kp, kt, ka, kn, km = jax.random.split(key, 5)

    B, L = 2, 8
    params = init_params(kp)
    prepped = prepare_node_embedder(params, max_len=L)     # one-time setup

    timesteps = jax.random.uniform(kt, (B, 1), jnp.float32)                    # [B,1]
    aatype = jax.random.randint(ka, (B, L), 0, NUM_AATYPES, dtype=jnp.int32)   # [B,L]
    node_repr_pre = jax.random.normal(kn, (B, L, C_NODE_PRE), jnp.float32)     # [B,L,1280]
    mask = (jax.random.uniform(km, (B, L)) > 0.2).astype(jnp.float32)          # [B,L]

    out = node_embedder_forward(prepped, timesteps, aatype, node_repr_pre, mask)
    out = jax.block_until_ready(out)
    assert out.shape == (B, L, C_S) and out.dtype == jnp.float32
    print("KERNEL_OK")
</pallas_src>

<mosaic_0001>
module attributes {stable_mosaic.version = 11 : i64} {
  func.func @node_mlp_rope_kernel(%arg0: i32, %arg1: i32, %arg2: memref<1x8x2xf32, #tpu.memory_space<vmem>>, %arg3: memref<1x8x1280xf32, #tpu.memory_space<vmem>>, %arg4: memref<32x64xf32, #tpu.memory_space<vmem>>, %arg5: memref<1x1x64xf32, #tpu.memory_space<vmem>>, %arg6: memref<1x64xf32, #tpu.memory_space<vmem>>, %arg7: memref<1280x64xbf16, #tpu.memory_space<vmem>>, %arg8: memref<64x128xf32, #tpu.memory_space<vmem>>, %arg9: memref<1x128xf32, #tpu.memory_space<vmem>>, %arg10: memref<8x128xbf16, #tpu.memory_space<vmem>>, %arg11: memref<1x8x64xf32, #tpu.memory_space<vmem>>) attributes {dimension_semantics = [#tpu.dimension_semantics<parallel>, #tpu.dimension_semantics<parallel>], iteration_bounds = array<i64: 1, 2>, scalar_prefetch = 0 : i64, scratch_operands = 0 : i64, tpu.core_type = #tpu.core_type<tc>, window_params = [{transform_indices = @transform_0, window_bounds = array<i64: 1, 8, 2>}, {transform_indices = @transform_1, window_bounds = array<i64: 1, 8, 1280>}, {pipeline_mode = #tpu.pipeline_mode<synchronous>, transform_indices = @transform_2, window_bounds = array<i64: 32, 64>}, {transform_indices = @transform_3, window_bounds = array<i64: 1, 1, 64>}, {pipeline_mode = #tpu.pipeline_mode<synchronous>, transform_indices = @transform_4, window_bounds = array<i64: 1, 64>}, {pipeline_mode = #tpu.pipeline_mode<synchronous>, transform_indices = @transform_5, window_bounds = array<i64: 1280, 64>}, {pipeline_mode = #tpu.pipeline_mode<synchronous>, transform_indices = @transform_6, window_bounds = array<i64: 64, 128>}, {pipeline_mode = #tpu.pipeline_mode<synchronous>, transform_indices = @transform_7, window_bounds = array<i64: 1, 128>}, {transform_indices = @transform_8, window_bounds = array<i64: 8, 128>}, {transform_indices = @transform_9, window_bounds = array<i64: 1, 8, 64>}]} {
    %c0 = arith.constant 0 : index
    %c0_0 = arith.constant 0 : index
    %c0_1 = arith.constant 0 : index
    %0 = vector.load %arg3[%c0, %c0_0, %c0_1] : memref<1x8x1280xf32, #tpu.memory_space<vmem>>, vector<1x8x1280xf32>
    %1 = vector.shape_cast %0 : vector<1x8x1280xf32> to vector<8x1280xf32>
    %2 = arith.truncf %1 : vector<8x1280xf32> to vector<8x1280xbf16>
    %c0_2 = arith.constant 0 : index
    %c0_3 = arith.constant 0 : index
    %3 = vector.load %arg7[%c0_2, %c0_3] : memref<1280x64xbf16, #tpu.memory_space<vmem>>, vector<1280x64xbf16>
    %cst = arith.constant dense<0.000000e+00> : vector<8x64xf32>
    %4 = tpu.matmul %2, %3, %cst {dimension_numbers = #tpu.dot_dimension_numbers<[1], [0], [0], [1], [0, 0, 1, 1], [], []>} : vector<8x1280xbf16>, vector<1280x64xbf16>, vector<8x64xf32> -> vector<8x64xf32>
    %c0_4 = arith.constant 0 : index
    %c0_5 = arith.constant 0 : index
    %c0_6 = arith.constant 0 : index
    %5 = vector.load %arg2[%c0_4, %c0_5, %c0_6] : memref<1x8x2xf32, #tpu.memory_space<vmem>>, vector<1x8x2xf32>
    %6 = vector.shape_cast %5 : vector<1x8x2xf32> to vector<8x2xf32>
    %7 = vector.extract_strided_slice %6 {offsets = [0, 0], sizes = [8, 1], strides = [1, 1]} : vector<8x2xf32> to vector<8x1xf32>
    %8 = vector.extract_strided_slice %6 {offsets = [0, 1], sizes = [8, 1], strides = [1, 1]} : vector<8x2xf32> to vector<8x1xf32>
    %9 = tpu.iota {dimensions = array<i32: 1>} : vector<8x32xi32>
    %10 = arith.sitofp %9 : vector<8x32xi32> to vector<8x32xf32>
    %11 = vector.broadcast %7 : vector<8x1xf32> to vector<8x32xf32>
    %12 = arith.cmpf oeq, %10, %11 : vector<8x32xf32>
    %13 = arith.extui %12 : vector<8x32xi1> to vector<8x32xi32>
    %14 = arith.sitofp %13 : vector<8x32xi32> to vector<8x32xf32>
    %c0_7 = arith.constant 0 : index
    %c0_8 = arith.constant 0 : index
    %15 = vector.load %arg4[%c0_7, %c0_8] : memref<32x64xf32, #tpu.memory_space<vmem>>, vector<32x64xf32>
    %cst_9 = arith.constant dense<0.000000e+00> : vector<8x64xf32>
    %16 = tpu.matmul %14, %15, %cst_9 {dimension_numbers = #tpu.dot_dimension_numbers<[1], [0], [0], [1], [0, 0, 1, 1], [], []>} : vector<8x32xf32>, vector<32x64xf32>, vector<8x64xf32> -> vector<8x64xf32>
    %c0_10 = arith.constant 0 : index
    %c0_11 = arith.constant 0 : index
    %c0_12 = arith.constant 0 : index
    %17 = vector.load %arg5[%c0_10, %c0_11, %c0_12] : memref<1x1x64xf32, #tpu.memory_space<vmem>>, vector<1x1x64xf32>
    %18 = vector.shape_cast %17 : vector<1x1x64xf32> to vector<1x64xf32>
    %19 = vector.broadcast %18 : vector<1x64xf32> to vector<8x64xf32>
    %20 = arith.addf %16, %19 : vector<8x64xf32>
    %21 = vector.broadcast %8 : vector<8x1xf32> to vector<8x64xf32>
    %22 = arith.mulf %20, %21 : vector<8x64xf32>
    %23 = arith.addf %4, %22 : vector<8x64xf32>
    %c0_13 = arith.constant 0 : index
    %c0_14 = arith.constant 0 : index
    %24 = vector.load %arg6[%c0_13, %c0_14] : memref<1x64xf32, #tpu.memory_space<vmem>>, vector<1x64xf32>
    %25 = vector.broadcast %24 : vector<1x64xf32> to vector<8x64xf32>
    %26 = arith.addf %23, %25 : vector<8x64xf32>
    %cst_15 = arith.constant 0.000000e+00 : f32
    %27 = vector.broadcast %cst_15 : f32 to vector<8x64xf32>
    %28 = arith.maximumf %26, %27 : vector<8x64xf32>
    %c0_16 = arith.constant 0 : index
    %c0_17 = arith.constant 0 : index
    %29 = vector.load %arg8[%c0_16, %c0_17] : memref<64x128xf32, #tpu.memory_space<vmem>>, vector<64x128xf32>
    %cst_18 = arith.constant dense<0.000000e+00> : vector<8x128xf32>
    %30 = tpu.matmul %28, %29, %cst_18 {dimension_numbers = #tpu.dot_dimension_numbers<[1], [0], [0], [1], [0, 0, 1, 1], [], []>} : vector<8x64xf32>, vector<64x128xf32>, vector<8x128xf32> -> vector<8x128xf32>
    %c0_19 = arith.constant 0 : index
    %c0_20 = arith.constant 0 : index
    %31 = vector.load %arg9[%c0_19, %c0_20] : memref<1x128xf32, #tpu.memory_space<vmem>>, vector<1x128xf32>
    %32 = vector.broadcast %31 : vector<1x128xf32> to vector<8x128xf32>
    %33 = arith.addf %30, %32 : vector<8x128xf32>
    %c0_21 = arith.constant 0 : index
    %c0_22 = arith.constant 0 : index
    %34 = vector.load %arg10[%c0_21, %c0_22] : memref<8x128xbf16, #tpu.memory_space<vmem>>, vector<8x128xbf16>
    %35 = arith.extf %34 : vector<8x128xbf16> to vector<8x128xf32>
    %36 = arith.mulf %33, %35 : vector<8x128xf32>
    %37 = vector.extract_strided_slice %36 {offsets = [0, 0], sizes = [8, 64], strides = [1, 1]} : vector<8x128xf32> to vector<8x64xf32>
    %38 = vector.extract_strided_slice %36 {offsets = [0, 64], sizes = [8, 64], strides = [1, 1]} : vector<8x128xf32> to vector<8x64xf32>
    %39 = arith.addf %37, %38 : vector<8x64xf32>
    %c0_23 = arith.constant 0 : index
    %c0_24 = arith.constant 0 : index
    %c0_25 = arith.constant 0 : index
    %40 = vector.load %arg11[%c0_23, %c0_24, %c0_25] : memref<1x8x64xf32, #tpu.memory_space<vmem>>, vector<1x8x64xf32>
    %41 = vector.shape_cast %40 : vector<1x8x64xf32> to vector<8x64xf32>
    %42 = vector.shape_cast %39 : vector<8x64xf32> to vector<1x8x64xf32>
    tpu.vector_store %arg11[%c0_23, %c0_24, %c0_25], %42 {strides = array<i32>} : memref<1x8x64xf32, #tpu.memory_space<vmem>>, vector<1x8x64xf32>,
    return
  }
  func.func @transform_0(%arg0: i32, %arg1: i32) -> (i32, i32, i32) {
    %c0_i32 = arith.constant 0 : i32
    %c0_i32_0 = arith.constant 0 : i32
    return %arg1, %arg0, %c0_i32 : i32, i32, i32
  }
  func.func @transform_1(%arg0: i32, %arg1: i32) -> (i32, i32, i32) {
    %c0_i32 = arith.constant 0 : i32
    %c0_i32_0 = arith.constant 0 : i32
    return %arg1, %arg0, %c0_i32 : i32, i32, i32
  }
  func.func @transform_2(%arg0: i32, %arg1: i32) -> (i32, i32) {
    %c0_i32 = arith.constant 0 : i32
    %c0_i32_0 = arith.constant 0 : i32
    %c0_i32_1 = arith.constant 0 : i32
    return %c0_i32, %c0_i32_0 : i32, i32
  }
  func.func @transform_3(%arg0: i32, %arg1: i32) -> (i32, i32, i32) {
    %c0_i32 = arith.constant 0 : i32
    %c0_i32_0 = arith.constant 0 : i32
    %c0_i32_1 = arith.constant 0 : i32
    return %arg1, %c0_i32, %c0_i32_0 : i32, i32, i32
  }
  func.func @transform_4(%arg0: i32, %arg1: i32) -> (i32, i32) {
    %c0_i32 = arith.constant 0 : i32
    %c0_i32_0 = arith.constant 0 : i32
    %c0_i32_1 = arith.constant 0 : i32
    return %c0_i32, %c0_i32_0 : i32, i32
  }
  func.func @transform_5(%arg0: i32, %arg1: i32) -> (i32, i32) {
    %c0_i32 = arith.constant 0 : i32
    %c0_i32_0 = arith.constant 0 : i32
    %c0_i32_1 = arith.constant 0 : i32
    return %c0_i32, %c0_i32_0 : i32, i32
  }
  func.func @transform_6(%arg0: i32, %arg1: i32) -> (i32, i32) {
    %c0_i32 = arith.constant 0 : i32
    %c0_i32_0 = arith.constant 0 : i32
    %c0_i32_1 = arith.constant 0 : i32
    return %c0_i32, %c0_i32_0 : i32, i32
  }
  func.func @transform_7(%arg0: i32, %arg1: i32) -> (i32, i32) {
    %c0_i32 = arith.constant 0 : i32
    %c0_i32_0 = arith.constant 0 : i32
    %c0_i32_1 = arith.constant 0 : i32
    return %c0_i32, %c0_i32_0 : i32, i32
  }
  func.func @transform_8(%arg0: i32, %arg1: i32) -> (i32, i32) {
    %c0_i32 = arith.constant 0 : i32
    %c0_i32_0 = arith.constant 0 : i32
    return %arg0, %c0_i32 : i32, i32
  }
  func.func @transform_9(%arg0: i32, %arg1: i32) -> (i32, i32, i32) {
    %c0_i32 = arith.constant 0 : i32
    %c0_i32_0 = arith.constant 0 : i32
    return %arg1, %arg0, %c0_i32 : i32, i32, i32
  }
}

</mosaic_0001>

<llo_original>
// kernel: tpu_custom_call.1
$region0: #{tpu_custom_call.1}
  #allocation0 [shape = 'u32[]', space=smem, size = 0x4, offset = 0x4, fixed_abs, tag = 'smem constant byte address 0x4 - core index']
  #allocation1 [shape = 'u32[144,128]{1,0:T(1,128)}', space=vmem, size = 0x12000, scoped, tag = 'internal scratch']
  %s0 = inlined_call_operand.vmem [shape: f32[2,8,2], index: 0, kind: input, shape index: {}]
  %s1 = inlined_call_operand.vmem [shape: f32[2,8,1280], index: 1, kind: input, shape index: {}]
  %s2 = inlined_call_operand.vmem [shape: f32[32,64], index: 2, kind: input, shape index: {}]
  %s3 = inlined_call_operand.vmem [shape: f32[2,1,64], index: 3, kind: input, shape index: {}]
  %s4 = inlined_call_operand.vmem [shape: f32[1,64], index: 4, kind: input, shape index: {}]
  %s5 = inlined_call_operand.vmem [shape: bf16[1280,64], index: 5, kind: input, shape index: {}]
  %s6 = inlined_call_operand.vmem [shape: f32[64,128], index: 6, kind: input, shape index: {}]
  %s7 = inlined_call_operand.vmem [shape: f32[1,128], index: 7, kind: input, shape index: {}]
  %s8 = inlined_call_operand.vmem [shape: bf16[8,128], index: 8, kind: input, shape index: {}]
  %s9 = inlined_call_operand.hbm [shape: f32[2,8,64], index: 9, kind: output, shape index: {}]
  %s10 = sld [smem:[#allocation0]]
  $region69: #{tpu_custom_call.1} parent=0
    _
  %s12 = ssub.s32 1, %s10
  %s13 = scalar_select 0, %s12, %s10
  $region1: #{tpu_custom_call.1} parent=0
    #allocation2 [shape = 'u8[8192]{0}', space=vmem, size = 0x2000, scoped, tag = 'output window, operand 0']
    #allocation3 [shape = 's32[2]{0}', space=sflag, size = 0x8, scoped, tag = 'scoped memory for tpu_custom_call.1']
    %14 = vsyncpa [#allocation3], 0
    %s15 = scalar_lea.sflag [#allocation3], 1
    %16 = vsyncpa %s15, 0
    loop: start=0, step=1, limit=4
    $region2: #{tpu_custom_call.1} parent=1 // loop_pre_header
      _
    $region3: #{tpu_custom_call.1} parent=1 // loop_header
      %s18 = sphi 0, %s22
      %p19 = scmp.ge.s32.totalorder %s18, 4
      %s25 = sphi 0, %s37
      %s26 = sphi 0, %s33
      %s27 = sphi 0, %s25
      %s28 = sphi 0, %s26
      %s29 = sphi 0, %s27
      %s30 = sphi 0, %s28
      %s42 = sphi 0, %s44
      %s45 = sphi 0, %s42
      %s46 = sphi 0, %s45
      %s62 = sphi 0, %s46
      %s70 = sphi 0, %s72
      %s73 = sphi 0, %s70
      %s74 = sphi 0, %s73
      %s90 = sphi 0, %s74
      %s94 = sphi 0, %s94
      %s96 = sphi 0, %s94
      %s97 = sphi 0, %s96
      %s111 = sphi 0, %s97
      %s117 = sphi 0, %s119
      %s120 = sphi 0, %s117
      %s121 = sphi 0, %s120
      %s137 = sphi 0, %s121
      %s141 = sphi 0, %s141
      %s143 = sphi 0, %s141
      %s144 = sphi 0, %s143
      %s158 = sphi 0, %s144
      %s162 = sphi 0, %s162
      %s164 = sphi 0, %s162
      %s165 = sphi 0, %s164
      %s179 = sphi 0, %s165
      %s183 = sphi 0, %s183
      %s185 = sphi 0, %s183
      %s186 = sphi 0, %s185
      %s200 = sphi 0, %s186
      %s204 = sphi 0, %s204
      %s206 = sphi 0, %s204
      %s207 = sphi 0, %s206
      %s221 = sphi 0, %s207
      %s227 = sphi 0, %s229
      %s230 = sphi 0, %s227
      %s231 = sphi 0, %s230
      %s247 = sphi 0, %s231
      %s255 = sphi 0, %s257
      %s258 = sphi 0, %s255
      %s259 = sphi 0, %s258
      %s275 = sphi 0, %s259
    $region4: #{tpu_custom_call.1} parent=1 // loop_header_branch
      %21 = sbr.rel (%p19) target = $region8
    $region5: #{tpu_custom_call.1} parent=1 // loop_body
      %s23 = ssub.s32 %s18, 1
      %s24 = ssub.s32 %s18, 2
      %s31 = sadd.s32 1, %s26
      %p32 = scmp.ge.s32.totalorder %s31, 2
      %s33 = scalar_select %p32, 0, %s31
      %s34 = sadd.s32 1, %s25
      %s35 = scalar_select %p32, %s34, %s25
      %p36 = scmp.ge.s32.totalorder %s35, 1
      %s37 = scalar_select %p36, 0, %s35
      %s38 = ssub.s32 %s26, %s33
      %s39 = ssub.s32 %s25, %s37
      %s40 = sor.u32 %s38, %s39
      %p41 = scmp.eq.s32.totalorder %s40, 0
      %s43 = sadd.s32 %s42, 1
      %s44 = scalar_select %p41, %s42, %s43
      %p47 = pneg %p41
      %p48 = scmp.eq.s32.totalorder %s18, 1
      %p49 = por %p47, %p48
      %p50 = scmp.ne.s32.totalorder %s42, %s45
      %p51 = scmp.eq.s32.totalorder %s18, 0
      %p52 = por %p50, %p51
      %p53 = scmp.ne.s32.totalorder %s42, %s45
      %p54 = scmp.eq.s32.totalorder %s23, 1
      %p55 = por %p53, %p54
      %p56 = scmp.ne.s32.totalorder %s45, %s46
      %p57 = scmp.eq.s32.totalorder %s23, 0
      %p58 = por %p56, %p57
      %p59 = scmp.ne.s32.totalorder %s45, %s46
      %p60 = scmp.eq.s32.totalorder %s24, 1
      %p61 = por %p59, %p60
      %p63 = scmp.ne.s32.totalorder %s46, %s62
      %p64 = scmp.eq.s32.totalorder %s24, 0
      %p65 = por %p63, %p64
      %s66 = ssub.s32 %s26, %s33
      %s67 = ssub.s32 %s25, %s37
      %s68 = sor.u32 %s66, %s67
      %p69 = scmp.eq.s32.totalorder %s68, 0
      %s71 = sadd.s32 %s70, 1
      %s72 = scalar_select %p69, %s70, %s71
      %p75 = pneg %p69
      %p76 = scmp.eq.s32.totalorder %s18, 1
      %p77 = por %p75, %p76
      %p78 = scmp.ne.s32.totalorder %s70, %s73
      %p79 = scmp.eq.s32.totalorder %s18, 0
      %p80 = por %p78, %p79
      %p81 = scmp.ne.s32.totalorder %s70, %s73
      %p82 = scmp.eq.s32.totalorder %s23, 1
      %p83 = por %p81, %p82
      %p84 = scmp.ne.s32.totalorder %s73, %s74
      %p85 = scmp.eq.s32.totalorder %s23, 0
      %p86 = por %p84, %p85
      %p87 = scmp.ne.s32.totalorder %s73, %s74
      %p88 = scmp.eq.s32.totalorder %s24, 1
      %p89 = por %p87, %p88
      %p91 = scmp.ne.s32.totalorder %s74, %s90
      %p92 = scmp.eq.s32.totalorder %s24, 0
      %p93 = por %p91, %p92
      %s95 = sadd.s32 %s94, 1
      %p98 = scmp.eq.s32.totalorder %s18, 1
      %p99 = scmp.ne.s32.totalorder %s94, %s96
      %p100 = scmp.eq.s32.totalorder %s18, 0
      %p101 = por %p99, %p100
      %p102 = scmp.ne.s32.totalorder %s94, %s96
      %p103 = scmp.eq.s32.totalorder %s23, 1
      %p104 = por %p102, %p103
      %p105 = scmp.ne.s32.totalorder %s96, %s97
      %p106 = scmp.eq.s32.totalorder %s23, 0
      %p107 = por %p105, %p106
      %p108 = scmp.ne.s32.totalorder %s96, %s97
      %p109 = scmp.eq.s32.totalorder %s24, 1
      %p110 = por %p108, %p109
      %p112 = scmp.ne.s32.totalorder %s97, %s111
      %p113 = scmp.eq.s32.totalorder %s24, 0
      %p114 = por %p112, %p113
      %s115 = ssub.s32 %s26, %s33
      %p116 = scmp.eq.s32.totalorder %s115, 0
      %s118 = sadd.s32 %s117, 1
      %s119 = scalar_select %p116, %s117, %s118
      %p122 = pneg %p116
      %p123 = scmp.eq.s32.totalorder %s18, 1
      %p124 = por %p122, %p123
      %p125 = scmp.ne.s32.totalorder %s117, %s120
      %p126 = scmp.eq.s32.totalorder %s18, 0
      %p127 = por %p125, %p126
      %p128 = scmp.ne.s32.totalorder %s117, %s120
      %p129 = scmp.eq.s32.totalorder %s23, 1
      %p130 = por %p128, %p129
      %p131 = scmp.ne.s32.totalorder %s120, %s121
      %p132 = scmp.eq.s32.totalorder %s23, 0
      %p133 = por %p131, %p132
      %p134 = scmp.ne.s32.totalorder %s120, %s121
      %p135 = scmp.eq.s32.totalorder %s24, 1
      %p136 = por %p134, %p135
      %p138 = scmp.ne.s32.totalorder %s121, %s137
      %p139 = scmp.eq.s32.totalorder %s24, 0
      %p140 = por %p138, %p139
      %s142 = sadd.s32 %s141, 1
      %p145 = scmp.eq.s32.totalorder %s18, 1
      %p146 = scmp.ne.s32.totalorder %s141, %s143
      %p147 = scmp.eq.s32.totalorder %s18, 0
      %p148 = por %p146, %p147
      %p149 = scmp.ne.s32.totalorder %s141, %s143
      %p150 = scmp.eq.s32.totalorder %s23, 1
      %p151 = por %p149, %p150
      %p152 = scmp.ne.s32.totalorder %s143, %s144
      %p153 = scmp.eq.s32.totalorder %s23, 0
      %p154 = por %p152, %p153
      %p155 = scmp.ne.s32.totalorder %s143, %s144
      %p156 = scmp.eq.s32.totalorder %s24, 1
      %p157 = por %p155, %p156
      %p159 = scmp.ne.s32.totalorder %s144, %s158
      %p160 = scmp.eq.s32.totalorder %s24, 0
      %p161 = por %p159, %p160
      %s163 = sadd.s32 %s162, 1
      %p166 = scmp.eq.s32.totalorder %s18, 1
      %p167 = scmp.ne.s32.totalorder %s162, %s164
      %p168 = scmp.eq.s32.totalorder %s18, 0
      %p169 = por %p167, %p168
      %p170 = scmp.ne.s32.totalorder %s162, %s164
      %p171 = scmp.eq.s32.totalorder %s23, 1
      %p172 = por %p170, %p171
      %p173 = scmp.ne.s32.totalorder %s164, %s165
      %p174 = scmp.eq.s32.totalorder %s23, 0
      %p175 = por %p173, %p174
      %p176 = scmp.ne.s32.totalorder %s164, %s165
      %p177 = scmp.eq.s32.totalorder %s24, 1
      %p178 = por %p176, %p177
      %p180 = scmp.ne.s32.totalorder %s165, %s179
      %p181 = scmp.eq.s32.totalorder %s24, 0
      %p182 = por %p180, %p181
      %s184 = sadd.s32 %s183, 1
      %p187 = scmp.eq.s32.totalorder %s18, 1
      %p188 = scmp.ne.s32.totalorder %s183, %s185
      %p189 = scmp.eq.s32.totalorder %s18, 0
      %p190 = por %p188, %p189
      %p191 = scmp.ne.s32.totalorder %s183, %s185
      %p192 = scmp.eq.s32.totalorder %s23, 1
      %p193 = por %p191, %p192
      %p194 = scmp.ne.s32.totalorder %s185, %s186
      %p195 = scmp.eq.s32.totalorder %s23, 0
      %p196 = por %p194, %p195
      %p197 = scmp.ne.s32.totalorder %s185, %s186
      %p198 = scmp.eq.s32.totalorder %s24, 1
      %p199 = por %p197, %p198
      %p201 = scmp.ne.s32.totalorder %s186, %s200
      %p202 = scmp.eq.s32.totalorder %s24, 0
      %p203 = por %p201, %p202
      %s205 = sadd.s32 %s204, 1
      %p208 = scmp.eq.s32.totalorder %s18, 1
      %p209 = scmp.ne.s32.totalorder %s204, %s206
      %p210 = scmp.eq.s32.totalorder %s18, 0
      %p211 = por %p209, %p210
      %p212 = scmp.ne.s32.totalorder %s204, %s206
      %p213 = scmp.eq.s32.totalorder %s23, 1
      %p214 = por %p212, %p213
      %p215 = scmp.ne.s32.totalorder %s206, %s207
      %p216 = scmp.eq.s32.totalorder %s23, 0
      %p217 = por %p215, %p216
      %p218 = scmp.ne.s32.totalorder %s206, %s207
      %p219 = scmp.eq.s32.totalorder %s24, 1
      %p220 = por %p218, %p219
      %p222 = scmp.ne.s32.totalorder %s207, %s221
      %p223 = scmp.eq.s32.totalorder %s24, 0
      %p224 = por %p222, %p223
      %s225 = ssub.s32 %s25, %s37
      %p226 = scmp.eq.s32.totalorder %s225, 0
      %s228 = sadd.s32 %s227, 1
      %s229 = scalar_select %p226, %s227, %s228
      %p232 = pneg %p226
      %p233 = scmp.eq.s32.totalorder %s18, 1
      %p234 = por %p232, %p233
      %p235 = scmp.ne.s32.totalorder %s227, %s230
      %p236 = scmp.eq.s32.totalorder %s18, 0
      %p237 = por %p235, %p236
      %p238 = scmp.ne.s32.totalorder %s227, %s230
      %p239 = scmp.eq.s32.totalorder %s23, 1
      %p240 = por %p238, %p239
      %p241 = scmp.ne.s32.totalorder %s230, %s231
      %p242 = scmp.eq.s32.totalorder %s23, 0
      %p243 = por %p241, %p242
      %p244 = scmp.ne.s32.totalorder %s230, %s231
      %p245 = scmp.eq.s32.totalorder %s24, 1
      %p246 = por %p244, %p245
      %p248 = scmp.ne.s32.totalorder %s231, %s247
      %p249 = scmp.eq.s32.totalorder %s24, 0
      %p250 = por %p248, %p249
      %s251 = ssub.s32 %s26, %s33
      %s252 = ssub.s32 %s25, %s37
      %s253 = sor.u32 %s251, %s252
      %p254 = scmp.eq.s32.totalorder %s253, 0
      %s256 = sadd.s32 %s255, 1
      %s257 = scalar_select %p254, %s255, %s256
      %p260 = pneg %p254
      %p261 = scmp.eq.s32.totalorder %s18, 1
      %p262 = por %p260, %p261
      %p263 = scmp.ne.s32.totalorder %s255, %s258
      %p264 = scmp.eq.s32.totalorder %s18, 0
      %p265 = por %p263, %p264
      %p266 = scmp.ne.s32.totalorder %s255, %s258
      %p267 = scmp.eq.s32.totalorder %s23, 1
      %p268 = por %p266, %p267
      %p269 = scmp.ne.s32.totalorder %s258, %s259
      %p270 = scmp.eq.s32.totalorder %s23, 0
      %p271 = por %p269, %p270
      %p272 = scmp.ne.s32.totalorder %s258, %s259
      %p273 = scmp.eq.s32.totalorder %s24, 1
      %p274 = por %p272, %p273
      %p276 = scmp.ne.s32.totalorder %s259, %s275
      %p277 = scmp.eq.s32.totalorder %s24, 0
      %p278 = por %p276, %p277
      %p279 = scmp.le.s32.totalorder 1, %s18
      %p280 = scmp.lt.s32.totalorder %s18, 3
      %p281 = pnand %p279, %p280
      %p282 = pneg %p281
      // Predicated region
      $region9: #{tpu_custom_call.1} parent=5 // pred_check
        _
      $region10: #{tpu_custom_call.1} parent=5 // pred_check_branch
        %284 = sbr.rel (%p281) target = $region12
      $region11: #{tpu_custom_call.1} parent=5 // pred_region
        %s285 = ssub.s32 %s18, 1
        // Predicated region
        $region13: #{tpu_custom_call.1} parent=11 // pred_check
          %p286 = pneg %p107
        $region14: #{tpu_custom_call.1} parent=11 // pred_check_branch
          %288 = sbr.rel (%p286) target = $region16
        $region15: #{tpu_custom_call.1} parent=11 // pred_region
          _
        $region16: #{tpu_custom_call.1} parent=11 // pred_fallthru
          _
        // Predicated region
        $region17: #{tpu_custom_call.1} parent=11 // pred_check
          %p289 = pneg %p154
        $region18: #{tpu_custom_call.1} parent=11 // pred_check_branch
          %291 = sbr.rel (%p289) target = $region20
        $region19: #{tpu_custom_call.1} parent=11 // pred_region
          _
        $region20: #{tpu_custom_call.1} parent=11 // pred_fallthru
          _
        // Predicated region
        $region21: #{tpu_custom_call.1} parent=11 // pred_check
          %p292 = pneg %p175
        $region22: #{tpu_custom_call.1} parent=11 // pred_check_branch
          %294 = sbr.rel (%p292) target = $region24
        $region23: #{tpu_custom_call.1} parent=11 // pred_region
          _
        $region24: #{tpu_custom_call.1} parent=11 // pred_fallthru
          _
        // Predicated region
        $region25: #{tpu_custom_call.1} parent=11 // pred_check
          %p295 = pneg %p196
        $region26: #{tpu_custom_call.1} parent=11 // pred_check_branch
          %297 = sbr.rel (%p295) target = $region28
        $region27: #{tpu_custom_call.1} parent=11 // pred_region
          _
        $region28: #{tpu_custom_call.1} parent=11 // pred_fallthru
          _
        // Predicated region
        $region29: #{tpu_custom_call.1} parent=11 // pred_check
          %p298 = pneg %p217
        $region30: #{tpu_custom_call.1} parent=11 // pred_check_branch
          %300 = sbr.rel (%p298) target = $region32
        $region31: #{tpu_custom_call.1} parent=11 // pred_region
          _
        $region32: #{tpu_custom_call.1} parent=11 // pred_fallthru
          _
        // Predicated region
        $region33: #{tpu_custom_call.1} parent=11 // pred_check
          %p301 = pneg %p243
        $region34: #{tpu_custom_call.1} parent=11 // pred_check_branch
          %303 = sbr.rel (%p301) target = $region36
        $region35: #{tpu_custom_call.1} parent=11 // pred_region
          %p304 = scmp.lt.s32.totalorder %s27, 0
          %s305 = scalar_select %p304, %s27, 0
          %s306 = smul.addr %s305, 4
          %s307 = scalar_lea.vmem %s8, %s306
        $region36: #{tpu_custom_call.1} parent=11 // pred_fallthru
          _
      $region12: #{tpu_custom_call.1} parent=5 // pred_fallthru
        _
      %p308 = scmp.lt.s32.totalorder %s18, 2
      // Predicated region
      $region37: #{tpu_custom_call.1} parent=5 // pred_check
        %p309 = pneg %p308
      $region38: #{tpu_custom_call.1} parent=5 // pred_check_branch
        %311 = sbr.rel (%p309) target = $region40
      $region39: #{tpu_custom_call.1} parent=5 // pred_region
        // Predicated region
        $region41: #{tpu_custom_call.1} parent=39 // pred_check
          %p312 = pneg %p52
        $region42: #{tpu_custom_call.1} parent=39 // pred_check_branch
          %314 = sbr.rel (%p312) target = $region44
        $region43: #{tpu_custom_call.1} parent=39 // pred_region
          %p315 = scmp.lt.s32.totalorder %s26, 1
          %s316 = scalar_select %p315, %s26, 1
          %p317 = scmp.lt.s32.totalorder %s25, 0
          %s318 = scalar_select %p317, %s25, 0
          %s319 = sadd.s32 %s318, %s316
          %s320 = smul.addr %s319, 8
          %s321 = scalar_lea.vmem %s0, %s320
        $region44: #{tpu_custom_call.1} parent=39 // pred_fallthru
          _
        // Predicated region
        $region45: #{tpu_custom_call.1} parent=39 // pred_check
          %p322 = pneg %p80
        $region46: #{tpu_custom_call.1} parent=39 // pred_check_branch
          %324 = sbr.rel (%p322) target = $region48
        $region47: #{tpu_custom_call.1} parent=39 // pred_region
          %p325 = scmp.lt.s32.totalorder %s26, 1
          %s326 = scalar_select %p325, %s26, 1
          %p327 = scmp.lt.s32.totalorder %s25, 0
          %s328 = scalar_select %p327, %s25, 0
          %s329 = smul.addr %s328, 10
          %s330 = smul.addr %s326, 10
          %s331 = sadd.s32 %s329, %s330
          %s332 = smul.addr %s331, 8
          %s333 = scalar_lea.vmem %s1, %s332
        $region48: #{tpu_custom_call.1} parent=39 // pred_fallthru
          _
        // Predicated region
        $region49: #{tpu_custom_call.1} parent=39 // pred_check
          %p334 = pneg %p127
        $region50: #{tpu_custom_call.1} parent=39 // pred_check_branch
          %336 = sbr.rel (%p334) target = $region52
        $region51: #{tpu_custom_call.1} parent=39 // pred_region
          %p337 = scmp.lt.s32.totalorder %s26, 1
          %s338 = scalar_select %p337, %s26, 1
          %s339 = scalar_lea.vmem %s3, %s338
        $region52: #{tpu_custom_call.1} parent=39 // pred_fallthru
          _
      $region40: #{tpu_custom_call.1} parent=5 // pred_fallthru
        _
      %p340 = scmp.le.s32.totalorder 1, %s18
      %p341 = scmp.lt.s32.totalorder %s18, 3
      %p342 = pnand %p340, %p341
      %p343 = pneg %p342
      // Predicated region
      $region53: #{tpu_custom_call.1} parent=5 // pred_check
        _
      $region54: #{tpu_custom_call.1} parent=5 // pred_check_branch
        %345 = sbr.rel (%p342) target = $region56
      $region55: #{tpu_custom_call.1} parent=5 // pred_region
        %s346 = ssub.s32 %s18, 1
        %p347 = scmp.lt.s32.totalorder %s28, 1
        %s348 = scalar_select %p347, %s28, 1
        %p349 = scmp.lt.s32.totalorder %s27, 0
        %s350 = scalar_select %p349, %s27, 0
        %s351 = sadd.s32 %s350, %s348
        %s352 = smul.addr %s351, 8
        %s353 = scalar_lea.vmem %s0, %s352
        %p354 = pneg %p58
        %p355 = pneg %p55
        %p356 = scmp.lt.s32.totalorder %s28, 1
        %s357 = scalar_select %p356, %s28, 1
        %p358 = scmp.lt.s32.totalorder %s27, 0
        %s359 = scalar_select %p358, %s27, 0
        %s360 = smul.addr %s359, 10
        %s361 = smul.addr %s357, 10
        %s362 = sadd.s32 %s360, %s361
        %s363 = smul.addr %s362, 8
        %s364 = scalar_lea.vmem %s1, %s363
        %p365 = pneg %p86
        %p366 = pneg %p83
        %p367 = pneg %p107
        %p368 = pneg %p104
        %p369 = scmp.lt.s32.totalorder %s28, 1
        %s370 = scalar_select %p369, %s28, 1
        %s371 = scalar_lea.vmem %s3, %s370
        %p372 = pneg %p133
        %p373 = pneg %p130
        %p374 = pneg %p154
        %p375 = pneg %p151
        %p376 = pneg %p175
        %p377 = pneg %p172
        %p378 = pneg %p196
        %p379 = pneg %p193
        %p380 = pneg %p217
        %p381 = pneg %p214
        %p382 = scmp.lt.s32.totalorder %s27, 0
        %s383 = scalar_select %p382, %s27, 0
        %s384 = smul.addr %s383, 4
        %s385 = scalar_lea.vmem %s8, %s384
        %p386 = pneg %p243
        %p387 = pneg %p240
        %p388 = pneg %p271
        %p389 = pneg %p268
        %s390 = sand.u32 %s258, 1
        %s391 = scalar_lea.sflag [#allocation3], %s390
        %s392 = sand.u32 %s258, 1
        %s393 = smul.addr %s392, 8
        %s394 = scalar_lea.vmem [#allocation2], %s393
        %p395 = scmp.lt.s32.totalorder %s28, 1
        %s396 = scalar_select %p395, %s28, 1
        %p397 = scmp.lt.s32.totalorder %s27, 0
        %s398 = scalar_select %p397, %s27, 0
        %s399 = sadd.s32 %s398, %s396
        %s400 = smul.addr %s399, 8
        %s401 = scalar_lea.vmem %s0, %s400
        %p402 = scmp.lt.s32.totalorder %s28, 1
        %s403 = scalar_select %p402, %s28, 1
        %p404 = scmp.lt.s32.totalorder %s27, 0
        %s405 = scalar_select %p404, %s27, 0
        %s406 = smul.addr %s405, 10
        %s407 = smul.addr %s403, 10
        %s408 = sadd.s32 %s406, %s407
        %s409 = smul.addr %s408, 8
        %s410 = scalar_lea.vmem %s1, %s409
        %p411 = scmp.lt.s32.totalorder %s28, 1
        %s412 = scalar_select %p411, %s28, 1
        %s413 = scalar_lea.vmem %s3, %s412
        %p414 = scmp.lt.s32.totalorder %s27, 0
        %s415 = scalar_select %p414, %s27, 0
        %s416 = smul.addr %s415, 4
        %s417 = scalar_lea.vmem %s8, %s416
        %v419 = vld [vmem:[%s410] sm:$0xff]
        %v420 = vld [vmem:[%s410 + $0x8] sm:$0xff]
        %v421 = vld [vmem:[%s410 + $0x10] sm:$0xff]
        %v422 = vld [vmem:[%s410 + $0x18] sm:$0xff]
        %v423 = vld [vmem:[%s410 + $0x20] sm:$0xff]
        %v424 = vld [vmem:[%s410 + $0x28] sm:$0xff]
        %v425 = vld [vmem:[%s410 + $0x30] sm:$0xff]
        %v426 = vld [vmem:[%s410 + $0x38] sm:$0xff]
        %v427 = vld [vmem:[%s410 + $0x40] sm:$0xff]
        %v428 = vld [vmem:[%s410 + $0x48] sm:$0xff]
        %v429 = vpack.c.bf16 %v419, %v419
        %v430 = vpack.c.bf16 %v420, %v420
        %v431 = vpack.c.bf16 %v421, %v421
        %v432 = vpack.c.bf16 %v422, %v422
        %v433 = vpack.c.bf16 %v423, %v423
        %v434 = vpack.c.bf16 %v424, %v424
        %v435 = vpack.c.bf16 %v425, %v425
        %v436 = vpack.c.bf16 %v426, %v426
        %v437 = vpack.c.bf16 %v427, %v427
        %v438 = vpack.c.bf16 %v428, %v428
        %v439 = vld [vmem:[%s5] sm:$0xf]
        %v440 = vld [vmem:[%s5 + $0x4] sm:$0xf]
        %v441 = vld [vmem:[%s5 + $0x8] sm:$0xf]
        %v442 = vld [vmem:[%s5 + $0xc] sm:$0xf]
        %v443 = vld [vmem:[%s5 + $0x10] sm:$0xf]
        %v444 = vld [vmem:[%s5 + $0x14] sm:$0xf]
        %v445 = vld [vmem:[%s5 + $0x18] sm:$0xf]
        %v446 = vld [vmem:[%s5 + $0x1c] sm:$0xf]
        %v447 = vld [vmem:[%s5 + $0x20] sm:$0xf]
        %v448 = vld [vmem:[%s5 + $0x24] sm:$0xf]
        %v449 = vld [vmem:[%s5 + $0x28] sm:$0xf]
        %v450 = vld [vmem:[%s5 + $0x2c] sm:$0xf]
        %v451 = vld [vmem:[%s5 + $0x30] sm:$0xf]
        %v452 = vld [vmem:[%s5 + $0x34] sm:$0xf]
        %v453 = vld [vmem:[%s5 + $0x38] sm:$0xf]
        %v454 = vld [vmem:[%s5 + $0x3c] sm:$0xf]
        %v455 = vld [vmem:[%s5 + $0x40] sm:$0xf]
        %v456 = vld [vmem:[%s5 + $0x44] sm:$0xf]
        %v457 = vld [vmem:[%s5 + $0x48] sm:$0xf]
        %v458 = vld [vmem:[%s5 + $0x4c] sm:$0xf]
        %v459 = vld [vmem:[%s5 + $0x50] sm:$0xf]
        %v460 = vld [vmem:[%s5 + $0x54] sm:$0xf]
        %v461 = vld [vmem:[%s5 + $0x58] sm:$0xf]
        %v462 = vld [vmem:[%s5 + $0x5c] sm:$0xf]
        %v463 = vld [vmem:[%s5 + $0x60] sm:$0xf]
        %v464 = vld [vmem:[%s5 + $0x64] sm:$0xf]
        %v465 = vld [vmem:[%s5 + $0x68] sm:$0xf]
        %v466 = vld [vmem:[%s5 + $0x6c] sm:$0xf]
        %v467 = vld [vmem:[%s5 + $0x70] sm:$0xf]
        %v468 = vld [vmem:[%s5 + $0x74] sm:$0xf]
        %v469 = vld [vmem:[%s5 + $0x78] sm:$0xf]
        %v470 = vld [vmem:[%s5 + $0x7c] sm:$0xf]
        %v471 = vld [vmem:[%s5 + $0x80] sm:$0xf]
        %v472 = vld [vmem:[%s5 + $0x84] sm:$0xf]
        %v473 = vld [vmem:[%s5 + $0x88] sm:$0xf]
        %v474 = vld [vmem:[%s5 + $0x8c] sm:$0xf]
        %v475 = vld [vmem:[%s5 + $0x90] sm:$0xf]
        %v476 = vld [vmem:[%s5 + $0x94] sm:$0xf]
        %v477 = vld [vmem:[%s5 + $0x98] sm:$0xf]
        %v478 = vld [vmem:[%s5 + $0x9c] sm:$0xf]
        %v479 = vld [vmem:[%s5 + $0xa0] sm:$0xf]
        %v480 = vld [vmem:[%s5 + $0xa4] sm:$0xf]
        %v481 = vld [vmem:[%s5 + $0xa8] sm:$0xf]
        %v482 = vld [vmem:[%s5 + $0xac] sm:$0xf]
        %v483 = vld [vmem:[%s5 + $0xb0] sm:$0xf]
        %v484 = vld [vmem:[%s5 + $0xb4] sm:$0xf]
        %v485 = vld [vmem:[%s5 + $0xb8] sm:$0xf]
        %v486 = vld [vmem:[%s5 + $0xbc] sm:$0xf]
        %v487 = vld [vmem:[%s5 + $0xc0] sm:$0xf]
        %v488 = vld [vmem:[%s5 + $0xc4] sm:$0xf]
        %v489 = vld [vmem:[%s5 + $0xc8] sm:$0xf]
        %v490 = vld [vmem:[%s5 + $0xcc] sm:$0xf]
        %v491 = vld [vmem:[%s5 + $0xd0] sm:$0xf]
        %v492 = vld [vmem:[%s5 + $0xd4] sm:$0xf]
        %v493 = vld [vmem:[%s5 + $0xd8] sm:$0xf]
        %v494 = vld [vmem:[%s5 + $0xdc] sm:$0xf]
        %v495 = vld [vmem:[%s5 + $0xe0] sm:$0xf]
        %v496 = vld [vmem:[%s5 + $0xe4] sm:$0xf]
        %v497 = vld [vmem:[%s5 + $0xe8] sm:$0xf]
        %v498 = vld [vmem:[%s5 + $0xec] sm:$0xf]
        %v499 = vld [vmem:[%s5 + $0xf0] sm:$0xf]
        %v500 = vld [vmem:[%s5 + $0xf4] sm:$0xf]
        %v501 = vld [vmem:[%s5 + $0xf8] sm:$0xf]
        %v502 = vld [vmem:[%s5 + $0xfc] sm:$0xf]
        %v503 = vld [vmem:[%s5 + $0x100] sm:$0xf]
        %v504 = vld [vmem:[%s5 + $0x104] sm:$0xf]
        %v505 = vld [vmem:[%s5 + $0x108] sm:$0xf]
        %v506 = vld [vmem:[%s5 + $0x10c] sm:$0xf]
        %v507 = vld [vmem:[%s5 + $0x110] sm:$0xf]
        %v508 = vld [vmem:[%s5 + $0x114] sm:$0xf]
        %v509 = vld [vmem:[%s5 + $0x118] sm:$0xf]
        %v510 = vld [vmem:[%s5 + $0x11c] sm:$0xf]
        %v511 = vld [vmem:[%s5 + $0x120] sm:$0xf]
        %v512 = vld [vmem:[%s5 + $0x124] sm:$0xf]
        %v513 = vld [vmem:[%s5 + $0x128] sm:$0xf]
        %v514 = vld [vmem:[%s5 + $0x12c] sm:$0xf]
        %v515 = vld [vmem:[%s5 + $0x130] sm:$0xf]
        %v516 = vld [vmem:[%s5 + $0x134] sm:$0xf]
        %v517 = vld [vmem:[%s5 + $0x138] sm:$0xf]
        %v518 = vld [vmem:[%s5 + $0x13c] sm:$0xf]
        %v519 = vld [vmem:[%s5 + $0x140] sm:$0xf]
        %v520 = vld [vmem:[%s5 + $0x144] sm:$0xf]
        %v521 = vld [vmem:[%s5 + $0x148] sm:$0xf]
        %v522 = vld [vmem:[%s5 + $0x14c] sm:$0xf]
        %v523 = vld [vmem:[%s5 + $0x150] sm:$0xf]
        %v524 = vld [vmem:[%s5 + $0x154] sm:$0xf]
        %v525 = vld [vmem:[%s5 + $0x158] sm:$0xf]
        %v526 = vld [vmem:[%s5 + $0x15c] sm:$0xf]
        %v527 = vld [vmem:[%s5 + $0x160] sm:$0xf]
        %v528 = vld [vmem:[%s5 + $0x164] sm:$0xf]
        %v529 = vld [vmem:[%s5 + $0x168] sm:$0xf]
        %v530 = vld [vmem:[%s5 + $0x16c] sm:$0xf]
        %v531 = vld [vmem:[%s5 + $0x170] sm:$0xf]
        %v532 = vld [vmem:[%s5 + $0x174] sm:$0xf]
        %v533 = vld [vmem:[%s5 + $0x178] sm:$0xf]
        %v534 = vld [vmem:[%s5 + $0x17c] sm:$0xf]
        %v535 = vld [vmem:[%s5 + $0x180] sm:$0xf]
        %v536 = vld [vmem:[%s5 + $0x184] sm:$0xf]
        %v537 = vld [vmem:[%s5 + $0x188] sm:$0xf]
        %v538 = vld [vmem:[%s5 + $0x18c] sm:$0xf]
        %v539 = vld [vmem:[%s5 + $0x190] sm:$0xf]
        %v540 = vld [vmem:[%s5 + $0x194] sm:$0xf]
        %v541 = vld [vmem:[%s5 + $0x198] sm:$0xf]
        %v542 = vld [vmem:[%s5 + $0x19c] sm:$0xf]
        %v543 = vld [vmem:[%s5 + $0x1a0] sm:$0xf]
        %v544 = vld [vmem:[%s5 + $0x1a4] sm:$0xf]
        %v545 = vld [vmem:[%s5 + $0x1a8] sm:$0xf]
        %v546 = vld [vmem:[%s5 + $0x1ac] sm:$0xf]
        %v547 = vld [vmem:[%s5 + $0x1b0] sm:$0xf]
        %v548 = vld [vmem:[%s5 + $0x1b4] sm:$0xf]
        %v549 = vld [vmem:[%s5 + $0x1b8] sm:$0xf]
        %v550 = vld [vmem:[%s5 + $0x1bc] sm:$0xf]
        %v551 = vld [vmem:[%s5 + $0x1c0] sm:$0xf]
        %v552 = vld [vmem:[%s5 + $0x1c4] sm:$0xf]
        %v553 = vld [vmem:[%s5 + $0x1c8] sm:$0xf]
        %v554 = vld [vmem:[%s5 + $0x1cc] sm:$0xf]
        %v555 = vld [vmem:[%s5 + $0x1d0] sm:$0xf]
        %v556 = vld [vmem:[%s5 + $0x1d4] sm:$0xf]
        %v557 = vld [vmem:[%s5 + $0x1d8] sm:$0xf]
        %v558 = vld [vmem:[%s5 + $0x1dc] sm:$0xf]
        %v559 = vld [vmem:[%s5 + $0x1e0] sm:$0xf]
        %v560 = vld [vmem:[%s5 + $0x1e4] sm:$0xf]
        %v561 = vld [vmem:[%s5 + $0x1e8] sm:$0xf]
        %v562 = vld [vmem:[%s5 + $0x1ec] sm:$0xf]
        %v563 = vld [vmem:[%s5 + $0x1f0] sm:$0xf]
        %v564 = vld [vmem:[%s5 + $0x1f4] sm:$0xf]
        %v565 = vld [vmem:[%s5 + $0x1f8] sm:$0xf]
        %v566 = vld [vmem:[%s5 + $0x1fc] sm:$0xf]
        %v567 = vld [vmem:[%s5 + $0x200] sm:$0xf]
        %v568 = vld [vmem:[%s5 + $0x204] sm:$0xf]
        %v569 = vld [vmem:[%s5 + $0x208] sm:$0xf]
        %v570 = vld [vmem:[%s5 + $0x20c] sm:$0xf]
        %v571 = vld [vmem:[%s5 + $0x210] sm:$0xf]
        %v572 = vld [vmem:[%s5 + $0x214] sm:$0xf]
        %v573 = vld [vmem:[%s5 + $0x218] sm:$0xf]
        %v574 = vld [vmem:[%s5 + $0x21c] sm:$0xf]
        %v575 = vld [vmem:[%s5 + $0x220] sm:$0xf]
        %v576 = vld [vmem:[%s5 + $0x224] sm:$0xf]
        %v577 = vld [vmem:[%s5 + $0x228] sm:$0xf]
        %v578 = vld [vmem:[%s5 + $0x22c] sm:$0xf]
        %v579 = vld [vmem:[%s5 + $0x230] sm:$0xf]
        %v580 = vld [vmem:[%s5 + $0x234] sm:$0xf]
        %v581 = vld [vmem:[%s5 + $0x238] sm:$0xf]
        %v582 = vld [vmem:[%s5 + $0x23c] sm:$0xf]
        %v583 = vld [vmem:[%s5 + $0x240] sm:$0xf]
        %v584 = vld [vmem:[%s5 + $0x244] sm:$0xf]
        %v585 = vld [vmem:[%s5 + $0x248] sm:$0xf]
        %v586 = vld [vmem:[%s5 + $0x24c] sm:$0xf]
        %v587 = vld [vmem:[%s5 + $0x250] sm:$0xf]
        %v588 = vld [vmem:[%s5 + $0x254] sm:$0xf]
        %v589 = vld [vmem:[%s5 + $0x258] sm:$0xf]
        %v590 = vld [vmem:[%s5 + $0x25c] sm:$0xf]
        %v591 = vld [vmem:[%s5 + $0x260] sm:$0xf]
        %v592 = vld [vmem:[%s5 + $0x264] sm:$0xf]
        %v593 = vld [vmem:[%s5 + $0x268] sm:$0xf]
        %v594 = vld [vmem:[%s5 + $0x26c] sm:$0xf]
        %v595 = vld [vmem:[%s5 + $0x270] sm:$0xf]
        %v596 = vld [vmem:[%s5 + $0x274] sm:$0xf]
        %v597 = vld [vmem:[%s5 + $0x278] sm:$0xf]
        %v598 = vld [vmem:[%s5 + $0x27c] sm:$0xf]
        %v599 = vld [vmem:[%s401] sm:$0xff]
        %v600 = vlaneseq
        %v601 = vand.u32 %v600, 127
        %v602 = vcvt.s32.f32 %v601
        %604 = vset.pattern.permute.xlu0 0
        %605 = vperm.xlu0 %604, %v599
        %v606 = vpop.permute.xlu0 %605
        %vm608 = vcmp.eq.f32.partialorder %v602, %v606
        %v609 = vsel %vm608, 1, 0
        %v610 = vcvt.s32.f32 %v609
        %v611 = vld [vmem:[%s2] sm:$0xff]
        %v612 = vld [vmem:[%s2 + $0x8] sm:$0xff]
        %v613 = vld [vmem:[%s2 + $0x10] sm:$0xff]
        %v614 = vld [vmem:[%s2 + $0x18] sm:$0xff]
        %v615 = vld [vmem:[%s413] sm:$0x1]
        %v617 = vlaneseq
        %v618 = vshrl.u32 %v617, 7
        %v619 = vsub.s32 0, %v618
        %v620 = vrot.slane %v615, %v619
        %vm622 = vcmask 261120
        %v624 = vsel %vm622, %v610, 0
        %626 = vmatprep.subr.mxu0 0.0
        %627 = vmatpush1.msra.mxu0 %v611
        %628 = vmatprep.subr.mxu0 0.0
        %629 = vmatpush1.msra.mxu0 %v612
        %630 = vmatprep.subr.mxu0 0.0
        %631 = vmatpush1.msra.mxu0 %v613
        %632 = vmatprep.subr.mxu0 0.0
        %633 = vmatpush1.msra.mxu0 %v614
        %634 = vmatprep.subr.mxu0 0.0
        %635 = vmatpush1.msra.mxu0 0.0
        %636 = vmatprep.subr.mxu0 0.0
        %637 = vmatpush1.msra.mxu0 0.0
        %638 = vmatprep.subr.mxu0 0.0
        %639 = vmatpush1.msra.mxu0 0.0
        %640 = vmatprep.subr.mxu0 0.0
        %641 = vmatpush1.msra.mxu0 0.0
        %642 = vmatprep.subr.mxu0 0.0
        %643 = vmatpush1.msra.mxu0 0.0
        %644 = vmatprep.subr.mxu0 0.0
        %645 = vmatpush1.msra.mxu0 0.0
        %646 = vmatprep.subr.mxu0 0.0
        %647 = vmatpush1.msra.mxu0 0.0
        %648 = vmatprep.subr.mxu0 0.0
        %649 = vmatpush1.msra.mxu0 0.0
        %650 = vmatprep.subr.mxu0 0.0
        %651 = vmatpush1.msra.mxu0 0.0
        %652 = vmatprep.subr.mxu0 0.0
        %653 = vmatpush1.msra.mxu0 0.0
        %654 = vmatprep.subr.mxu0 0.0
        %655 = vmatpush1.msra.mxu0 0.0
        %656 = vmatprep.subr.mxu0 0.0
        %657 = vmatpush1.msra.mxu0 0.0
        %658 = vmatprep.subr.mxu0 0.0
        %659 = vmatpush1.msra.mxu0 0.0
        %660 = vmatprep.subr.mxu0 0.0
        %661 = vmatpush1.msra.mxu0 0.0
        %662 = vmatprep.subr.mxu0 0.0
        %663 = vmatpush1.msra.mxu0 0.0
        %664 = vmatprep.subr.mxu0 0.0
        %665 = vmatpush1.msra.mxu0 0.0
        %666 = vmatprep.subr.mxu0 0.0
        %667 = vmatpush1.msra.mxu0 0.0
        %668 = vmatprep.subr.mxu0 0.0
        %669 = vmatpush1.msra.mxu0 0.0
        %670 = vmatprep.subr.mxu0 0.0
        %671 = vmatpush1.msra.mxu0 0.0
        %672 = vmatprep.subr.mxu0 0.0
        %673 = vmatpush1.msra.mxu0 0.0
        %674 = vmatprep.subr.mxu0 0.0
        %675 = vmatpush1.msra.mxu0 0.0
        %676 = vmatprep.subr.mxu0 0.0
        %677 = vmatpush1.msra.mxu0 0.0
        %678 = vmatprep.subr.mxu0 0.0
        %679 = vmatpush1.msra.mxu0 0.0
        %680 = vmatprep.subr.mxu0 0.0
        %681 = vmatpush1.msra.mxu0 0.0
        %682 = vmatprep.subr.mxu0 0.0
        %683 = vmatpush1.msra.mxu0 0.0
        %684 = vmatprep.subr.mxu0 0.0
        %685 = vmatpush1.msra.mxu0 0.0
        %686 = vmatprep.subr.mxu0 0.0
        %687 = vmatpush1.msra.mxu0 0.0
        %688 = vmatprep.subr.mxu0 0.0
        %689 = vmatpush1.msra.mxu0 0.0
        %690 = vmatprep.mubr.f32.mxu0 0.0
        %691 = vmatmul.mubr.f32.gmra.mrb[0].mxu0 %v624
        %v692 = vpop.f32.mrb[0].mxu0
        %v693 = vadd.f32 %v620, %v692
        %v694 = vpop.f32.mrb[0].mxu0
        %695 = vdwg.mxu0
        %696 = vset.pattern.permute.xlu0 1
        %697 = vperm.xlu0 %696, %v599
        %v698 = vpop.permute.xlu0 %697
        %v700 = vmul.f32 %v693, %v698
        %v861 = vunpack.c.l.b16 %v439
        %v862 = vunpack.c.l.b16 %v440
        %v863 = vunpack.c.l.b16 %v441
        %v864 = vunpack.c.l.b16 %v442
        %v865 = vunpack.c.l.b16 %v443
        %v866 = vunpack.c.l.b16 %v444
        %v867 = vunpack.c.l.b16 %v445
        %v868 = vunpack.c.l.b16 %v446
        %v869 = vunpack.c.l.b16 %v447
        %v870 = vunpack.c.l.b16 %v448
        %v871 = vunpack.c.l.b16 %v449
        %v872 = vunpack.c.l.b16 %v450
        %v873 = vunpack.c.l.b16 %v451
        %v874 = vunpack.c.l.b16 %v452
        %v875 = vunpack.c.l.b16 %v453
        %v876 = vunpack.c.l.b16 %v454
        %v877 = vunpack.c.l.b16 %v455
        %v878 = vunpack.c.l.b16 %v456
        %v879 = vunpack.c.l.b16 %v457
        %v880 = vunpack.c.l.b16 %v458
        %v881 = vunpack.c.l.b16 %v459
        %v882 = vunpack.c.l.b16 %v460
        %v883 = vunpack.c.l.b16 %v461
        %v884 = vunpack.c.l.b16 %v462
        %v885 = vunpack.c.l.b16 %v463
        %v886 = vunpack.c.l.b16 %v464
        %v887 = vunpack.c.l.b16 %v465
        %v888 = vunpack.c.l.b16 %v466
        %v889 = vunpack.c.l.b16 %v467
        %v890 = vunpack.c.l.b16 %v468
        %v891 = vunpack.c.l.b16 %v469
        %v892 = vunpack.c.l.b16 %v470
        %v893 = vunpack.c.l.b16 %v471
        %v894 = vunpack.c.l.b16 %v472
        %v895 = vunpack.c.l.b16 %v473
        %v896 = vunpack.c.l.b16 %v474
        %v897 = vunpack.c.l.b16 %v475
        %v898 = vunpack.c.l.b16 %v476
        %v899 = vunpack.c.l.b16 %v477
        %v900 = vunpack.c.l.b16 %v478
        %v901 = vunpack.c.l.b16 %v479
        %v902 = vunpack.c.l.b16 %v480
        %v903 = vunpack.c.l.b16 %v481
        %v904 = vunpack.c.l.b16 %v482
        %v905 = vunpack.c.l.b16 %v483
        %v906 = vunpack.c.l.b16 %v484
        %v907 = vunpack.c.l.b16 %v485
        %v908 = vunpack.c.l.b16 %v486
        %v909 = vunpack.c.l.b16 %v487
        %v910 = vunpack.c.l.b16 %v488
        %v911 = vunpack.c.l.b16 %v489
        %v912 = vunpack.c.l.b16 %v490
        %v913 = vunpack.c.l.b16 %v491
        %v914 = vunpack.c.l.b16 %v492
        %v915 = vunpack.c.l.b16 %v493
        %v916 = vunpack.c.l.b16 %v494
        %v917 = vunpack.c.l.b16 %v495
        %v918 = vunpack.c.l.b16 %v496
        %v919 = vunpack.c.l.b16 %v497
        %v920 = vunpack.c.l.b16 %v498
        %v921 = vunpack.c.l.b16 %v499
        %v922 = vunpack.c.l.b16 %v500
        %v923 = vunpack.c.l.b16 %v501
        %v924 = vunpack.c.l.b16 %v502
        %v925 = vunpack.c.l.b16 %v503
        %v926 = vunpack.c.l.b16 %v504
        %v927 = vunpack.c.l.b16 %v505
        %v928 = vunpack.c.l.b16 %v506
        %v929 = vunpack.c.l.b16 %v507
        %v930 = vunpack.c.l.b16 %v508
        %v931 = vunpack.c.l.b16 %v509
        %v932 = vunpack.c.l.b16 %v510
        %v933 = vunpack.c.l.b16 %v511
        %v934 = vunpack.c.l.b16 %v512
        %v935 = vunpack.c.l.b16 %v513
        %v936 = vunpack.c.l.b16 %v514
        %v937 = vunpack.c.l.b16 %v515
        %v938 = vunpack.c.l.b16 %v516
        %v939 = vunpack.c.l.b16 %v517
        %v940 = vunpack.c.l.b16 %v518
        %v941 = vunpack.c.l.b16 %v519
        %v942 = vunpack.c.l.b16 %v520
        %v943 = vunpack.c.l.b16 %v521
        %v944 = vunpack.c.l.b16 %v522
        %v945 = vunpack.c.l.b16 %v523
        %v946 = vunpack.c.l.b16 %v524
        %v947 = vunpack.c.l.b16 %v525
        %v948 = vunpack.c.l.b16 %v526
        %v949 = vunpack.c.l.b16 %v527
        %v950 = vunpack.c.l.b16 %v528
        %v951 = vunpack.c.l.b16 %v529
        %v952 = vunpack.c.l.b16 %v530
        %v953 = vunpack.c.l.b16 %v531
        %v954 = vunpack.c.l.b16 %v532
        %v955 = vunpack.c.l.b16 %v533
        %v956 = vunpack.c.l.b16 %v534
        %v957 = vunpack.c.l.b16 %v535
        %v958 = vunpack.c.l.b16 %v536
        %v959 = vunpack.c.l.b16 %v537
        %v960 = vunpack.c.l.b16 %v538
        %v961 = vunpack.c.l.b16 %v539
        %v962 = vunpack.c.l.b16 %v540
        %v963 = vunpack.c.l.b16 %v541
        %v964 = vunpack.c.l.b16 %v542
        %v965 = vunpack.c.l.b16 %v543
        %v966 = vunpack.c.l.b16 %v544
        %v967 = vunpack.c.l.b16 %v545
        %v968 = vunpack.c.l.b16 %v546
        %v969 = vunpack.c.l.b16 %v547
        %v970 = vunpack.c.l.b16 %v548
        %v971 = vunpack.c.l.b16 %v549
        %v972 = vunpack.c.l.b16 %v550
        %v973 = vunpack.c.l.b16 %v551
        %v974 = vunpack.c.l.b16 %v552
        %v975 = vunpack.c.l.b16 %v553
        %v976 = vunpack.c.l.b16 %v554
        %v977 = vunpack.c.l.b16 %v555
        %v978 = vunpack.c.l.b16 %v556
        %v979 = vunpack.c.l.b16 %v557
        %v980 = vunpack.c.l.b16 %v558
        %v981 = vunpack.c.l.b16 %v559
        %v982 = vunpack.c.l.b16 %v560
        %v983 = vunpack.c.l.b16 %v561
        %v984 = vunpack.c.l.b16 %v562
        %v985 = vunpack.c.l.b16 %v563
        %v986 = vunpack.c.l.b16 %v564
        %v987 = vunpack.c.l.b16 %v565
        %v988 = vunpack.c.l.b16 %v566
        %v989 = vunpack.c.l.b16 %v567
        %v990 = vunpack.c.l.b16 %v568
        %v991 = vunpack.c.l.b16 %v569
        %v992 = vunpack.c.l.b16 %v570
        %v993 = vunpack.c.l.b16 %v571
        %v994 = vunpack.c.l.b16 %v572
        %v995 = vunpack.c.l.b16 %v573
        %v996 = vunpack.c.l.b16 %v574
        %v997 = vunpack.c.l.b16 %v575
        %v998 = vunpack.c.l.b16 %v576
        %v999 = vunpack.c.l.b16 %v577
        %v1000 = vunpack.c.l.b16 %v578
        %v1001 = vunpack.c.l.b16 %v579
        %v1002 = vunpack.c.l.b16 %v580
        %v1003 = vunpack.c.l.b16 %v581
        %v1004 = vunpack.c.l.b16 %v582
        %v1005 = vunpack.c.l.b16 %v583
        %v1006 = vunpack.c.l.b16 %v584
        %v1007 = vunpack.c.l.b16 %v585
        %v1008 = vunpack.c.l.b16 %v586
        %v1009 = vunpack.c.l.b16 %v587
        %v1010 = vunpack.c.l.b16 %v588
        %v1011 = vunpack.c.l.b16 %v589
        %v1012 = vunpack.c.l.b16 %v590
        %v1013 = vunpack.c.l.b16 %v591
        %v1014 = vunpack.c.l.b16 %v592
        %v1015 = vunpack.c.l.b16 %v593
        %v1016 = vunpack.c.l.b16 %v594
        %v1017 = vunpack.c.l.b16 %v595
        %v1018 = vunpack.c.l.b16 %v596
        %v1019 = vunpack.c.l.b16 %v597
        %v1020 = vunpack.c.l.b16 %v598
        %v1021 = vpack.c.b16 %v862, %v861
        %v1022 = vpack.c.b16 %v864, %v863
        %v1023 = vpack.c.b16 %v866, %v865
        %v1024 = vpack.c.b16 %v868, %v867
        %v1025 = vpack.c.b16 %v870, %v869
        %v1026 = vpack.c.b16 %v872, %v871
        %v1027 = vpack.c.b16 %v874, %v873
        %v1028 = vpack.c.b16 %v876, %v875
        %v1029 = vpack.c.b16 %v878, %v877
        %v1030 = vpack.c.b16 %v880, %v879
        %v1031 = vpack.c.b16 %v882, %v881
        %v1032 = vpack.c.b16 %v884, %v883
        %v1033 = vpack.c.b16 %v886, %v885
        %v1034 = vpack.c.b16 %v888, %v887
        %v1035 = vpack.c.b16 %v890, %v889
        %v1036 = vpack.c.b16 %v892, %v891
        %v1037 = vpack.c.b16 %v894, %v893
        %v1038 = vpack.c.b16 %v896, %v895
        %v1039 = vpack.c.b16 %v898, %v897
        %v1040 = vpack.c.b16 %v900, %v899
        %v1041 = vpack.c.b16 %v902, %v901
        %v1042 = vpack.c.b16 %v904, %v903
        %v1043 = vpack.c.b16 %v906, %v905
        %v1044 = vpack.c.b16 %v908, %v907
        %v1045 = vpack.c.b16 %v910, %v909
        %v1046 = vpack.c.b16 %v912, %v911
        %v1047 = vpack.c.b16 %v914, %v913
        %v1048 = vpack.c.b16 %v916, %v915
        %v1049 = vpack.c.b16 %v918, %v917
        %v1050 = vpack.c.b16 %v920, %v919
        %v1051 = vpack.c.b16 %v922, %v921
        %v1052 = vpack.c.b16 %v924, %v923
        %v1053 = vpack.c.b16 %v926, %v925
        %v1054 = vpack.c.b16 %v928, %v927
        %v1055 = vpack.c.b16 %v930, %v929
        %v1056 = vpack.c.b16 %v932, %v931
        %v1057 = vpack.c.b16 %v934, %v933
        %v1058 = vpack.c.b16 %v936, %v935
        %v1059 = vpack.c.b16 %v938, %v937
        %v1060 = vpack.c.b16 %v940, %v939
        %v1061 = vpack.c.b16 %v942, %v941
        %v1062 = vpack.c.b16 %v944, %v943
        %v1063 = vpack.c.b16 %v946, %v945
        %v1064 = vpack.c.b16 %v948, %v947
        %v1065 = vpack.c.b16 %v950, %v949
        %v1066 = vpack.c.b16 %v952, %v951
        %v1067 = vpack.c.b16 %v954, %v953
        %v1068 = vpack.c.b16 %v956, %v955
        %v1069 = vpack.c.b16 %v958, %v957
        %v1070 = vpack.c.b16 %v960, %v959
        %v1071 = vpack.c.b16 %v962, %v961
        %v1072 = vpack.c.b16 %v964, %v963
        %v1073 = vpack.c.b16 %v966, %v965
        %v1074 = vpack.c.b16 %v968, %v967
        %v1075 = vpack.c.b16 %v970, %v969
        %v1076 = vpack.c.b16 %v972, %v971
        %v1077 = vpack.c.b16 %v974, %v973
        %v1078 = vpack.c.b16 %v976, %v975
        %v1079 = vpack.c.b16 %v978, %v977
        %v1080 = vpack.c.b16 %v980, %v979
        %v1081 = vpack.c.b16 %v982, %v981
        %v1082 = vpack.c.b16 %v984, %v983
        %v1083 = vpack.c.b16 %v986, %v985
        %v1084 = vpack.c.b16 %v988, %v987
        %v1085 = vpack.c.b16 %v990, %v989
        %v1086 = vpack.c.b16 %v992, %v991
        %v1087 = vpack.c.b16 %v994, %v993
        %v1088 = vpack.c.b16 %v996, %v995
        %v1089 = vpack.c.b16 %v998, %v997
        %v1090 = vpack.c.b16 %v1000, %v999
        %v1091 = vpack.c.b16 %v1002, %v1001
        %v1092 = vpack.c.b16 %v1004, %v1003
        %v1093 = vpack.c.b16 %v1006, %v1005
        %v1094 = vpack.c.b16 %v1008, %v1007
        %v1095 = vpack.c.b16 %v1010, %v1009
        %v1096 = vpack.c.b16 %v1012, %v1011
        %v1097 = vpack.c.b16 %v1014, %v1013
        %v1098 = vpack.c.b16 %v1016, %v1015
        %v1099 = vpack.c.b16 %v1018, %v1017
        %v1100 = vpack.c.b16 %v1020, %v1019
        %1181 = vmatprep.subr.bf16.mxu0 0
        %1182 = vmatpush1.bf16.msra.mxu0 %v1021
        %1183 = vmatprep.subr.bf16.mxu0 0
        %1184 = vmatpush1.bf16.msra.mxu0 %v1022
        %1185 = vmatprep.subr.bf16.mxu0 0
        %1186 = vmatpush1.bf16.msra.mxu0 %v1023
        %1187 = vmatprep.subr.bf16.mxu0 0
        %1188 = vmatpush1.bf16.msra.mxu0 %v1024
        %1189 = vmatprep.subr.bf16.mxu0 0
        %1190 = vmatpush1.bf16.msra.mxu0 %v1025
        %1191 = vmatprep.subr.bf16.mxu0 0
        %1192 = vmatpush1.bf16.msra.mxu0 %v1026
        %1193 = vmatprep.subr.bf16.mxu0 0
        %1194 = vmatpush1.bf16.msra.mxu0 %v1027
        %1195 = vmatprep.subr.bf16.mxu0 0
        %1196 = vmatpush1.bf16.msra.mxu0 %v1028
        %1197 = vmatprep.subr.bf16.mxu0 0
        %1198 = vmatpush1.bf16.msra.mxu0 %v1029
        %1199 = vmatprep.subr.bf16.mxu0 0
        %1200 = vmatpush1.bf16.msra.mxu0 %v1030
        %1201 = vmatprep.subr.bf16.mxu0 0
        %1202 = vmatpush1.bf16.msra.mxu0 %v1031
        %1203 = vmatprep.subr.bf16.mxu0 0
        %1204 = vmatpush1.bf16.msra.mxu0 %v1032
        %1205 = vmatprep.subr.bf16.mxu0 0
        %1206 = vmatpush1.bf16.msra.mxu0 %v1033
        %1207 = vmatprep.subr.bf16.mxu0 0
        %1208 = vmatpush1.bf16.msra.mxu0 %v1034
        %1209 = vmatprep.subr.bf16.mxu0 0
        %1210 = vmatpush1.bf16.msra.mxu0 %v1035
        %1211 = vmatprep.subr.bf16.mxu0 0
        %1212 = vmatpush1.bf16.msra.mxu0 %v1036
        %1213 = vmatprep.mubr.bf16.mxu0 %v430
        %1214 = vmatmul.mubr.bf16.gmra.mrb[0].mxu0 %v429
        %v1215 = vpop.f32.mrb[0].mxu0
        %v1216 = vadd.f32 %v700, %v1215
        %v1217 = vpop.f32.mrb[0].mxu0
        %v1218 = vpop.f32.mrb[0].mxu0
        %v1219 = vpop.f32.mrb[0].mxu0
        %1220 = vdwg.mxu0
        %1221 = vmatprep.subr.bf16.mxu0 0
        %1222 = vmatpush1.bf16.msra.mxu0 %v1037
        %1223 = vmatprep.subr.bf16.mxu0 0
        %1224 = vmatpush1.bf16.msra.mxu0 %v1038
        %1225 = vmatprep.subr.bf16.mxu0 0
        %1226 = vmatpush1.bf16.msra.mxu0 %v1039
        %1227 = vmatprep.subr.bf16.mxu0 0
        %1228 = vmatpush1.bf16.msra.mxu0 %v1040
        %1229 = vmatprep.subr.bf16.mxu0 0
        %1230 = vmatpush1.bf16.msra.mxu0 %v1041
        %1231 = vmatprep.subr.bf16.mxu0 0
        %1232 = vmatpush1.bf16.msra.mxu0 %v1042
        %1233 = vmatprep.subr.bf16.mxu0 0
        %1234 = vmatpush1.bf16.msra.mxu0 %v1043
        %1235 = vmatprep.subr.bf16.mxu0 0
        %1236 = vmatpush1.bf16.msra.mxu0 %v1044
        %1237 = vmatprep.subr.bf16.mxu0 0
        %1238 = vmatpush1.bf16.msra.mxu0 %v1045
        %1239 = vmatprep.subr.bf16.mxu0 0
        %1240 = vmatpush1.bf16.msra.mxu0 %v1046
        %1241 = vmatprep.subr.bf16.mxu0 0
        %1242 = vmatpush1.bf16.msra.mxu0 %v1047
        %1243 = vmatprep.subr.bf16.mxu0 0
        %1244 = vmatpush1.bf16.msra.mxu0 %v1048
        %1245 = vmatprep.subr.bf16.mxu0 0
        %1246 = vmatpush1.bf16.msra.mxu0 %v1049
        %1247 = vmatprep.subr.bf16.mxu0 0
        %1248 = vmatpush1.bf16.msra.mxu0 %v1050
        %1249 = vmatprep.subr.bf16.mxu0 0
        %1250 = vmatpush1.bf16.msra.mxu0 %v1051
        %1251 = vmatprep.subr.bf16.mxu0 0
        %1252 = vmatpush1.bf16.msra.mxu0 %v1052
        %1253 = vmatprep.mubr.bf16.mxu0 %v432
        %1254 = vmatmul.mubr.bf16.gmra.mrb[0].mxu0 %v431
        %v1255 = vpop.f32.mrb[0].mxu0
        %v1256 = vadd.f32 %v1216, %v1255
        %v1257 = vpop.f32.mrb[0].mxu0
        %v1258 = vpop.f32.mrb[0].mxu0
        %v1259 = vpop.f32.mrb[0].mxu0
        %1260 = vdwg.mxu0
        %1261 = vmatprep.subr.bf16.mxu0 0
        %1262 = vmatpush1.bf16.msra.mxu0 %v1053
        %1263 = vmatprep.subr.bf16.mxu0 0
        %1264 = vmatpush1.bf16.msra.mxu0 %v1054
        %1265 = vmatprep.subr.bf16.mxu0 0
        %1266 = vmatpush1.bf16.msra.mxu0 %v1055
        %1267 = vmatprep.subr.bf16.mxu0 0
        %1268 = vmatpush1.bf16.msra.mxu0 %v1056
        %1269 = vmatprep.subr.bf16.mxu0 0
        %1270 = vmatpush1.bf16.msra.mxu0 %v1057
        %1271 = vmatprep.subr.bf16.mxu0 0
        %1272 = vmatpush1.bf16.msra.mxu0 %v1058
        %1273 = vmatprep.subr.bf16.mxu0 0
        %1274 = vmatpush1.bf16.msra.mxu0 %v1059
        %1275 = vmatprep.subr.bf16.mxu0 0
        %1276 = vmatpush1.bf16.msra.mxu0 %v1060
        %1277 = vmatprep.subr.bf16.mxu0 0
        %1278 = vmatpush1.bf16.msra.mxu0 %v1061
        %1279 = vmatprep.subr.bf16.mxu0 0
        %1280 = vmatpush1.bf16.msra.mxu0 %v1062
        %1281 = vmatprep.subr.bf16.mxu0 0
        %1282 = vmatpush1.bf16.msra.mxu0 %v1063
        %1283 = vmatprep.subr.bf16.mxu0 0
        %1284 = vmatpush1.bf16.msra.mxu0 %v1064
        %1285 = vmatprep.subr.bf16.mxu0 0
        %1286 = vmatpush1.bf16.msra.mxu0 %v1065
        %1287 = vmatprep.subr.bf16.mxu0 0
        %1288 = vmatpush1.bf16.msra.mxu0 %v1066
        %1289 = vmatprep.subr.bf16.mxu0 0
        %1290 = vmatpush1.bf16.msra.mxu0 %v1067
        %1291 = vmatprep.subr.bf16.mxu0 0
        %1292 = vmatpush1.bf16.msra.mxu0 %v1068
        %1293 = vmatprep.mubr.bf16.mxu0 %v434
        %1294 = vmatmul.mubr.bf16.gmra.mrb[0].mxu0 %v433
        %v1295 = vpop.f32.mrb[0].mxu0
        %v1296 = vadd.f32 %v1256, %v1295
        %v1297 = vpop.f32.mrb[0].mxu0
        %v1298 = vpop.f32.mrb[0].mxu0
        %v1299 = vpop.f32.mrb[0].mxu0
        %1300 = vdwg.mxu0
        %1301 = vmatprep.subr.bf16.mxu0 0
        %1302 = vmatpush1.bf16.msra.mxu0 %v1069
        %1303 = vmatprep.subr.bf16.mxu0 0
        %1304 = vmatpush1.bf16.msra.mxu0 %v1070
        %1305 = vmatprep.subr.bf16.mxu0 0
        %1306 = vmatpush1.bf16.msra.mxu0 %v1071
        %1307 = vmatprep.subr.bf16.mxu0 0
        %1308 = vmatpush1.bf16.msra.mxu0 %v1072
        %1309 = vmatprep.subr.bf16.mxu0 0
        %1310 = vmatpush1.bf16.msra.mxu0 %v1073
        %1311 = vmatprep.subr.bf16.mxu0 0
        %1312 = vmatpush1.bf16.msra.mxu0 %v1074
        %1313 = vmatprep.subr.bf16.mxu0 0
        %1314 = vmatpush1.bf16.msra.mxu0 %v1075
        %1315 = vmatprep.subr.bf16.mxu0 0
        %1316 = vmatpush1.bf16.msra.mxu0 %v1076
        %1317 = vmatprep.subr.bf16.mxu0 0
        %1318 = vmatpush1.bf16.msra.mxu0 %v1077
        %1319 = vmatprep.subr.bf16.mxu0 0
        %1320 = vmatpush1.bf16.msra.mxu0 %v1078
        %1321 = vmatprep.subr.bf16.mxu0 0
        %1322 = vmatpush1.bf16.msra.mxu0 %v1079
        %1323 = vmatprep.subr.bf16.mxu0 0
        %1324 = vmatpush1.bf16.msra.mxu0 %v1080
        %1325 = vmatprep.subr.bf16.mxu0 0
        %1326 = vmatpush1.bf16.msra.mxu0 %v1081
        %1327 = vmatprep.subr.bf16.mxu0 0
        %1328 = vmatpush1.bf16.msra.mxu0 %v1082
        %1329 = vmatprep.subr.bf16.mxu0 0
        %1330 = vmatpush1.bf16.msra.mxu0 %v1083
        %1331 = vmatprep.subr.bf16.mxu0 0
        %1332 = vmatpush1.bf16.msra.mxu0 %v1084
        %1333 = vmatprep.mubr.bf16.mxu0 %v436
        %1334 = vmatmul.mubr.bf16.gmra.mrb[0].mxu0 %v435
        %v1335 = vpop.f32.mrb[0].mxu0
        %v1336 = vadd.f32 %v1296, %v1335
        %v1337 = vpop.f32.mrb[0].mxu0
        %v1338 = vpop.f32.mrb[0].mxu0
        %v1339 = vpop.f32.mrb[0].mxu0
        %1340 = vdwg.mxu0
        %1341 = vmatprep.subr.bf16.mxu0 0
        %1342 = vmatpush1.bf16.msra.mxu0 %v1085
        %1343 = vmatprep.subr.bf16.mxu0 0
        %1344 = vmatpush1.bf16.msra.mxu0 %v1086
        %1345 = vmatprep.subr.bf16.mxu0 0
        %1346 = vmatpush1.bf16.msra.mxu0 %v1087
        %1347 = vmatprep.subr.bf16.mxu0 0
        %1348 = vmatpush1.bf16.msra.mxu0 %v1088
        %1349 = vmatprep.subr.bf16.mxu0 0
        %1350 = vmatpush1.bf16.msra.mxu0 %v1089
        %1351 = vmatprep.subr.bf16.mxu0 0
        %1352 = vmatpush1.bf16.msra.mxu0 %v1090
        %1353 = vmatprep.subr.bf16.mxu0 0
        %1354 = vmatpush1.bf16.msra.mxu0 %v1091
        %1355 = vmatprep.subr.bf16.mxu0 0
        %1356 = vmatpush1.bf16.msra.mxu0 %v1092
        %1357 = vmatprep.subr.bf16.mxu0 0
        %1358 = vmatpush1.bf16.msra.mxu0 %v1093
        %1359 = vmatprep.subr.bf16.mxu0 0
        %1360 = vmatpush1.bf16.msra.mxu0 %v1094
        %1361 = vmatprep.subr.bf16.mxu0 0
        %1362 = vmatpush1.bf16.msra.mxu0 %v1095
        %1363 = vmatprep.subr.bf16.mxu0 0
        %1364 = vmatpush1.bf16.msra.mxu0 %v1096
        %1365 = vmatprep.subr.bf16.mxu0 0
        %1366 = vmatpush1.bf16.msra.mxu0 %v1097
        %1367 = vmatprep.subr.bf16.mxu0 0
        %1368 = vmatpush1.bf16.msra.mxu0 %v1098
        %1369 = vmatprep.subr.bf16.mxu0 0
        %1370 = vmatpush1.bf16.msra.mxu0 %v1099
        %1371 = vmatprep.subr.bf16.mxu0 0
        %1372 = vmatpush1.bf16.msra.mxu0 %v1100
        %1373 = vmatprep.mubr.bf16.mxu0 %v438
        %1374 = vmatmul.mubr.bf16.gmra.mrb[0].mxu0 %v437
        %v1375 = vpop.f32.mrb[0].mxu0
        %v1376 = vadd.f32 %v1336, %v1375
        %v1377 = vpop.f32.mrb[0].mxu0
        %v1378 = vpop.f32.mrb[0].mxu0
        %v1379 = vpop.f32.mrb[0].mxu0
        %1380 = vdwg.mxu0
        %v1381 = vld [vmem:[%s4] sm:$0x1]
        %v1383 = vlaneseq
        %v1384 = vshrl.u32 %v1383, 7
        %v1385 = vsub.s32 0, %v1384
        %v1386 = vrot.slane %v1381, %v1385
        %v1388 = vadd.f32 %v1376, %v1386
        %v1389 = vmax.f32 %v1388, 0.0
        %v1390 = vld [vmem:[%s6] sm:$0xff]
        %v1391 = vld [vmem:[%s6 + $0x8] sm:$0xff]
        %v1392 = vld [vmem:[%s6 + $0x10] sm:$0xff]
        %v1393 = vld [vmem:[%s6 + $0x18] sm:$0xff]
        %v1394 = vld [vmem:[%s6 + $0x20] sm:$0xff]
        %v1395 = vld [vmem:[%s6 + $0x28] sm:$0xff]
        %v1396 = vld [vmem:[%s6 + $0x30] sm:$0xff]
        %v1397 = vld [vmem:[%s6 + $0x38] sm:$0xff]
        %v1398 = vld [vmem:[%s7] sm:$0x1]
        %v1400 = vlaneseq
        %v1401 = vshrl.u32 %v1400, 7
        %v1402 = vsub.s32 0, %v1401
        %v1403 = vrot.slane %v1398, %v1402
        %vm1405 = vcmask 523264
        %v1407 = vsel %vm1405, %v1389, 0
        %1409 = vmatprep.subr.mxu0 0.0
        %1410 = vmatpush1.msra.mxu0 %v1390
        %1411 = vmatprep.subr.mxu0 0.0
        %1412 = vmatpush1.msra.mxu0 %v1391
        %1413 = vmatprep.subr.mxu0 0.0
        %1414 = vmatpush1.msra.mxu0 %v1392
        %1415 = vmatprep.subr.mxu0 0.0
        %1416 = vmatpush1.msra.mxu0 %v1393
        %1417 = vmatprep.subr.mxu0 0.0
        %1418 = vmatpush1.msra.mxu0 %v1394
        %1419 = vmatprep.subr.mxu0 0.0
        %1420 = vmatpush1.msra.mxu0 %v1395
        %1421 = vmatprep.subr.mxu0 0.0
        %1422 = vmatpush1.msra.mxu0 %v1396
        %1423 = vmatprep.subr.mxu0 0.0
        %1424 = vmatpush1.msra.mxu0 %v1397
        %1425 = vmatprep.subr.mxu0 0.0
        %1426 = vmatpush1.msra.mxu0 0.0
        %1427 = vmatprep.subr.mxu0 0.0
        %1428 = vmatpush1.msra.mxu0 0.0
        %1429 = vmatprep.subr.mxu0 0.0
        %1430 = vmatpush1.msra.mxu0 0.0
        %1431 = vmatprep.subr.mxu0 0.0
        %1432 = vmatpush1.msra.mxu0 0.0
        %1433 = vmatprep.subr.mxu0 0.0
        %1434 = vmatpush1.msra.mxu0 0.0
        %1435 = vmatprep.subr.mxu0 0.0
        %1436 = vmatpush1.msra.mxu0 0.0
        %1437 = vmatprep.subr.mxu0 0.0
        %1438 = vmatpush1.msra.mxu0 0.0
        %1439 = vmatprep.subr.mxu0 0.0
        %1440 = vmatpush1.msra.mxu0 0.0
        %1441 = vmatprep.subr.mxu0 0.0
        %1442 = vmatpush1.msra.mxu0 0.0
        %1443 = vmatprep.subr.mxu0 0.0
        %1444 = vmatpush1.msra.mxu0 0.0
        %1445 = vmatprep.subr.mxu0 0.0
        %1446 = vmatpush1.msra.mxu0 0.0
        %1447 = vmatprep.subr.mxu0 0.0
        %1448 = vmatpush1.msra.mxu0 0.0
        %1449 = vmatprep.subr.mxu0 0.0
        %1450 = vmatpush1.msra.mxu0 0.0
        %1451 = vmatprep.subr.mxu0 0.0
        %1452 = vmatpush1.msra.mxu0 0.0
        %1453 = vmatprep.subr.mxu0 0.0
        %1454 = vmatpush1.msra.mxu0 0.0
        %1455 = vmatprep.subr.mxu0 0.0
        %1456 = vmatpush1.msra.mxu0 0.0
        %1457 = vmatprep.subr.mxu0 0.0
        %1458 = vmatpush1.msra.mxu0 0.0
        %1459 = vmatprep.subr.mxu0 0.0
        %1460 = vmatpush1.msra.mxu0 0.0
        %1461 = vmatprep.subr.mxu0 0.0
        %1462 = vmatpush1.msra.mxu0 0.0
        %1463 = vmatprep.subr.mxu0 0.0
        %1464 = vmatpush1.msra.mxu0 0.0
        %1465 = vmatprep.subr.mxu0 0.0
        %1466 = vmatpush1.msra.mxu0 0.0
        %1467 = vmatprep.subr.mxu0 0.0
        %1468 = vmatpush1.msra.mxu0 0.0
        %1469 = vmatprep.subr.mxu0 0.0
        %1470 = vmatpush1.msra.mxu0 0.0
        %1471 = vmatprep.subr.mxu0 0.0
        %1472 = vmatpush1.msra.mxu0 0.0
        %1473 = vmatprep.mubr.f32.mxu0 0.0
        %1474 = vmatmul.mubr.f32.gmra.mrb[0].mxu0 %v1407
        %v1475 = vpop.f32.mrb[0].mxu0
        %v1476 = vadd.f32 %v1403, %v1475
        %v1477 = vpop.f32.mrb[0].mxu0
        %1478 = vdwg.mxu0
        %v1479 = vld [vmem:[%s417] sm:$0xf]
        %v1480 = vunpack.c.l.bf16 %v1479
        %v1481 = vmul.f32 %v1476, %v1480
        %1483 = vrot.lane.b32.xlu0 %v1481, 64
        %v1484 = vpop.permute.xlu0 %1483
        %v1486 = vadd.f32 %v1481, %v1484
        %1487 = vst.msk [vmem:[%s394] sm:$0xff] %vm1405, %v1486
        %s1488 = sand.u32 %s258, 1
        %s1489 = scalar_lea.sflag [#allocation3], %s1488
        %s1490 = sand.u32 %s258, 1
        %s1491 = smul.addr %s1490, 8
        %s1492 = scalar_lea.vmem [#allocation2], %s1491
        // Predicated region
        $region57: #{tpu_custom_call.1} parent=55 // pred_check
          %p1493 = pneg %p268
        $region58: #{tpu_custom_call.1} parent=55 // pred_check_branch
          %1495 = sbr.rel (%p1493) target = $region60
        $region59: #{tpu_custom_call.1} parent=55 // pred_region
          %s1497 = ssub.s32 128, 128
          %1498 = vsyncadd %s1489, %s1497
          %s1499 = sadd.s32 %s27, %s28
          %s1500 = smul.addr %s1499, 128
          %s1501 = scalar_lea.hbm %s9, %s1500
          %s1503 = sshll.u32 %s1492, 4
          %s1504 = int_to_ptr.vmem [resolvable:$true] %s1503
          %1506 = dma.vmem_to_hbm [thread:$0]  %s1504, 128, %s1501, %s1489
        $region60: #{tpu_custom_call.1} parent=55 // pred_fallthru
          _
      $region56: #{tpu_custom_call.1} parent=5 // pred_fallthru
        _
      %p1507 = scmp.le.s32.totalorder 2, %s18
      // Predicated region
      $region61: #{tpu_custom_call.1} parent=5 // pred_check
        %p1508 = pneg %p1507
      $region62: #{tpu_custom_call.1} parent=5 // pred_check_branch
        %1510 = sbr.rel (%p1508) target = $region64
      $region63: #{tpu_custom_call.1} parent=5 // pred_region
        %s1511 = ssub.s32 %s18, 2
        // Predicated region
        $region65: #{tpu_custom_call.1} parent=63 // pred_check
          %p1512 = pneg %p274
        $region66: #{tpu_custom_call.1} parent=63 // pred_check_branch
          %1514 = sbr.rel (%p1512) target = $region68
        $region67: #{tpu_custom_call.1} parent=63 // pred_region
          %s1515 = sand.u32 %s259, 1
          %s1516 = scalar_lea.sflag [#allocation3], %s1515
          %s1517 = sand.u32 %s259, 1
          %s1518 = smul.addr %s1517, 8
          %s1519 = scalar_lea.vmem [#allocation2], %s1518
          %1520 = dma.done %s1516, 128
        $region68: #{tpu_custom_call.1} parent=63 // pred_fallthru
          _
      $region64: #{tpu_custom_call.1} parent=5 // pred_fallthru
        _
    $region6: #{tpu_custom_call.1} parent=1 // loop_footer
      %s22 = sadd.s32 1, %s18
    $region7: #{tpu_custom_call.1} parent=1 // loop_footer_branch
      %17 = sbr.rel target = $region3
    $region8: #{tpu_custom_call.1} parent=1 // loop_exit
      _
    %1521 = vsyncpa [#allocation3], 1
    %s1522 = scalar_lea.sflag [#allocation3], 1
    %1523 = vsyncpa %s1522, 1

</llo_original>
